<compile_context>
chip_gen: v7x
topology: tpu7x:2x2x1
jax: 0.10.0
libtpu: 0.0.40
codegen_flags: <defaults>
</compile_context>

<pallas_src>
import jax
import jax.numpy as jnp
from jax.experimental import pallas as pl
from jax.experimental.pallas import tpu as pltpu


def _round_up(x, m):
    return ((x + m - 1) // m) * m


def _discriminator_kernel(img_ref, sty_ref, prm_ref,
                          w1i_ref, w1s_ref, w1p_ref, b1_ref,
                          w2_ref, b2_ref, w3_ref, b3_ref,
                          out_ref):
    # Layer 1: three bf16 MXU dots (img / style / prompt slices of w1),
    # f32 accumulation, then f32 bias + LeakyReLU(0.2).
    h = jnp.dot(img_ref[...], w1i_ref[...], preferred_element_type=jnp.float32)
    h = h + jnp.dot(sty_ref[...], w1s_ref[...], preferred_element_type=jnp.float32)
    h = h + jnp.dot(prm_ref[...], w1p_ref[...], preferred_element_type=jnp.float32)
    h = h + b1_ref[...]
    h = jnp.maximum(h, 0.2 * h)
    # Layer 2: cast activation operand to bf16 right before the dot (native
    # bf16 MXU path); elementwise math stays f32.
    h = jnp.dot(h.astype(jnp.bfloat16), w2_ref[...],
                preferred_element_type=jnp.float32) + b2_ref[...]
    h = jnp.maximum(h, 0.2 * h)
    # Layer 3: output padded to 128 lanes (unmasked stores); column 0 is the
    # real logit.
    o = jnp.dot(h.astype(jnp.bfloat16), w3_ref[...],
                preferred_element_type=jnp.float32) + b3_ref[...]
    out_ref[...] = o


def init_params(key, input_dim, h1=512, h2=256, std=0.02):
    """Matches nn.init.normal_(weight, 0, 0.02) + zero biases (f32 masters)."""
    k1, k2, k3 = jax.random.split(key, 3)
    w1 = (std * jax.random.normal(k1, (input_dim, h1))).astype(jnp.float32)
    b1 = jnp.zeros((h1,), jnp.float32)
    w2 = (std * jax.random.normal(k2, (h1, h2))).astype(jnp.float32)
    b2 = jnp.zeros((h2,), jnp.float32)
    w3 = (std * jax.random.normal(k3, (h2, 1))).astype(jnp.float32)
    b3 = jnp.zeros((1,), jnp.float32)
    return (w1, b1, w2, b2, w3, b3)


def prepare_params(params, img_flat_dim, style_dim, prompt_dim, out_lanes=128):
    """One-time prep (call ONCE after init / checkpoint load, not per forward):

      * bf16 weights (fed directly to the MXU by the kernel),
      * w1 split into img / style / prompt slices (no concat needed at runtime),
      * biases pre-reshaped to (1, H) f32,
      * final layer lane-padded to `out_lanes` outputs.
    """
    w1, b1, w2, b2, w3, b3 = params
    assert w1.shape[0] == img_flat_dim + style_dim + prompt_dim, w1.shape
    h1, h2 = w1.shape[1], w2.shape[1]
    w1_bf = w1.astype(jnp.bfloat16)
    w1_img = w1_bf[:img_flat_dim]
    w1_sty = w1_bf[img_flat_dim:img_flat_dim + style_dim]
    w1_prm = w1_bf[img_flat_dim + style_dim:]
    w2_p = w2.astype(jnp.bfloat16)
    w3_p = jnp.zeros((h2, out_lanes), jnp.bfloat16).at[:, :1].set(
        w3.astype(jnp.bfloat16))
    b1_p = b1.reshape(1, h1).astype(jnp.float32)
    b2_p = b2.reshape(1, h2).astype(jnp.float32)
    b3_p = jnp.zeros((1, out_lanes), jnp.float32).at[:, :1].set(
        b3.reshape(1, 1).astype(jnp.float32))
    return (w1_img, w1_sty, w1_prm, b1_p, w2_p, b2_p, w3_p, b3_p)


def discriminator_forward(img, style_vec, prompt_vec, prepared_params, *,
                          batch_tile=512):
    """img: (B, C, H, W), style_vec: (B, style_dim), prompt_vec: (B, prompt_dim).

    `prepared_params` must come from `prepare_params` (one-time prep).
    Returns the (B, 1) validity logits (eval-mode forward, f32).
    """
    w1i, w1s, w1p, b1, w2, b2, w3, b3 = prepared_params
    B = img.shape[0]

    # torch: img.detach(); flatten.  No concat: the three segments go to the
    # kernel separately (w1 is pre-split accordingly).  bf16 activation DMA.
    img = jax.lax.stop_gradient(img)
    img_flat = img.reshape(B, -1).astype(jnp.bfloat16)
    sty = style_vec.astype(jnp.bfloat16)
    prm = prompt_vec.astype(jnp.bfloat16)

    D_img, D_sty, D_prm = img_flat.shape[1], sty.shape[1], prm.shape[1]
    assert (D_img, D_sty, D_prm) == (w1i.shape[0], w1s.shape[0], w1p.shape[0])
    H1, H2, NOUT = w1i.shape[1], w2.shape[1], w3.shape[1]
    D = D_img + D_sty + D_prm

    # Pad ONLY the (small) activation batch dim; weights / K are untouched.
    Bp8 = max(8, _round_up(B, 8))
    if Bp8 >= 16:
        # Guarantee >= 2 grid steps so "parallel" can shard across both v7x
        # TensorCores (and larger batches pipeline across steps).
        TB = min(batch_tile, _round_up(pl.cdiv(Bp8, 2), 8))
    else:
        TB = Bp8
    Bp = _round_up(Bp8, TB)
    if Bp != B:
        pad = ((0, Bp - B), (0, 0))
        img_flat = jnp.pad(img_flat, pad)
        sty = jnp.pad(sty, pad)
        prm = jnp.pad(prm, pad)

    grid = (Bp // TB,)

    flops = 2 * Bp * (D * H1 + H1 * H2 + H2 * NOUT)
    bytes_accessed = (Bp * D * 2 + Bp * NOUT * 4              # bf16 x, f32 out
                      + (D * H1 + H1 * H2 + H2 * NOUT) * 2    # bf16 weights
                      + (H1 + H2 + NOUT) * 4)                 # f32 biases
    cost = pl.CostEstimate(flops=flops, transcendentals=0,
                           bytes_accessed=bytes_accessed)

    # VMEM budget (no f32 weight copies anymore): double-buffered bf16
    # activation tiles + f32 output tiles + (double-buffered) bf16 resident
    # weights + f32 biases + f32 intermediates headroom.  Cap well below the
    # 64 MiB physical VMEM of v7x.
    vmem_needed = (2 * TB * D * 2
                   + 2 * TB * NOUT * 4
                   + 2 * (D * H1 + H1 * H2 + H2 * NOUT) * 2
                   + 2 * (H1 + H2 + NOUT) * 4
                   + 3 * TB * H1 * 4)
    vmem_limit = int(min(max(vmem_needed + (4 << 20), 16 << 20), 56 << 20))

    out_padded = pl.pallas_call(
        _discriminator_kernel,
        out_shape=jax.ShapeDtypeStruct((Bp, NOUT), jnp.float32),
        grid=grid,
        in_specs=[
            pl.BlockSpec((TB, D_img), lambda i: (i, 0)),    # img tile (bf16)
            pl.BlockSpec((TB, D_sty), lambda i: (i, 0)),    # style tile (ragged K=26 ok: full-extent)
            pl.BlockSpec((TB, D_prm), lambda i: (i, 0)),    # prompt tile
            pl.BlockSpec((D_img, H1), lambda i: (0, 0)),    # w1 img slice, resident
            pl.BlockSpec((D_sty, H1), lambda i: (0, 0)),    # w1 style slice
            pl.BlockSpec((D_prm, H1), lambda i: (0, 0)),    # w1 prompt slice
            pl.BlockSpec((1, H1), lambda i: (0, 0)),        # b1
            pl.BlockSpec((H1, H2), lambda i: (0, 0)),       # w2
            pl.BlockSpec((1, H2), lambda i: (0, 0)),        # b2
            pl.BlockSpec((H2, NOUT), lambda i: (0, 0)),     # w3 (lane-padded)
            pl.BlockSpec((1, NOUT), lambda i: (0, 0)),      # b3 (lane-padded)
        ],
        out_specs=pl.BlockSpec((TB, NOUT), lambda i: (i, 0)),
        compiler_params=pltpu.CompilerParams(
            dimension_semantics=("parallel",),
            vmem_limit_bytes=vmem_limit),
        cost_estimate=cost,
    )(img_flat, sty, prm, w1i, w1s, w1p, b1, w2, b2, w3, b3)

    # Slice back to the real batch and the single logit column: (B, 1)
    return out_padded[:B, :1]


def _reference_forward_prepared(img, style_vec, prompt_vec, prepared_params):
    """Pure-JAX reference with the SAME bf16 operand path (tight check)."""
    w1i, w1s, w1p, b1, w2, b2, w3, b3 = prepared_params
    B = img.shape[0]
    img_flat = img.reshape(B, -1).astype(jnp.bfloat16)
    sty = style_vec.astype(jnp.bfloat16)
    prm = prompt_vec.astype(jnp.bfloat16)
    h = (jnp.dot(img_flat, w1i, preferred_element_type=jnp.float32)
         + jnp.dot(sty, w1s, preferred_element_type=jnp.float32)
         + jnp.dot(prm, w1p, preferred_element_type=jnp.float32)) + b1
    h = jnp.maximum(h, 0.2 * h)
    h = jnp.dot(h.astype(jnp.bfloat16), w2, preferred_element_type=jnp.float32) + b2
    h = jnp.maximum(h, 0.2 * h)
    o = jnp.dot(h.astype(jnp.bfloat16), w3, preferred_element_type=jnp.float32) + b3
    return o[:, :1]


def _reference_forward_f32(img, style_vec, prompt_vec, params):
    """Pure-f32 reference of the PyTorch forward (eval mode), master weights."""
    w1, b1, w2, b2, w3, b3 = params
    x = jnp.concatenate(
        [img.reshape(img.shape[0], -1), style_vec, prompt_vec], 1)
    h = x @ w1 + b1
    h = jnp.where(h > 0, h, 0.2 * h)
    h = h @ w2 + b2
    h = jnp.where(h > 0, h, 0.2 * h)
    return h @ w3 + b3


if __name__ == "__main__":
    # Small shapes consistent with the module's forward:
    B, C, H, W = 2, 3, 16, 16
    STYLE_DIM, PROMPT_DIM = 26, 384
    IMG_FLAT = C * H * W                           # 768
    input_dim = IMG_FLAT + STYLE_DIM + PROMPT_DIM  # 768 + 26 + 384 = 1178

    key = jax.random.PRNGKey(0)
    k_img, k_style, k_prompt, k_params = jax.random.split(key, 4)

    img = jax.random.normal(k_img, (B, C, H, W), jnp.float32)
    style_vec = jax.random.normal(k_style, (B, STYLE_DIM), jnp.float32)
    prompt_vec = jax.random.normal(k_prompt, (B, PROMPT_DIM), jnp.float32)

    params = init_params(k_params, input_dim)
    prepared = prepare_params(params, IMG_FLAT, STYLE_DIM, PROMPT_DIM)  # one-time

    out = discriminator_forward(img, style_vec, prompt_vec, prepared)
    out = jax.block_until_ready(out)
    assert out.shape == (B, 1), out.shape

    # Tight check vs. a reference using the same bf16 operand path.
    ref_p = _reference_forward_prepared(img, style_vec, prompt_vec, prepared)
    assert jnp.allclose(out, ref_p, atol=1e-2, rtol=1e-2), (out, ref_p)

    # Loose check vs. the pure-f32 torch-equivalent forward (bf16 quantization).
    ref_f32 = _reference_forward_f32(img, style_vec, prompt_vec, params)
    assert jnp.allclose(out, ref_f32, atol=5e-2, rtol=5e-2), (out, ref_f32)

    # Also exercise the multi-step grid path (padded batch >= 16 -> >= 2 steps).
    B2 = 64
    k_i2, k_s2, k_p2 = jax.random.split(jax.random.PRNGKey(1), 3)
    img2 = jax.random.normal(k_i2, (B2, C, H, W), jnp.float32)
    sty2 = jax.random.normal(k_s2, (B2, STYLE_DIM), jnp.float32)
    prm2 = jax.random.normal(k_p2, (B2, PROMPT_DIM), jnp.float32)
    out2 = jax.block_until_ready(
        discriminator_forward(img2, sty2, prm2, prepared))
    ref2 = _reference_forward_prepared(img2, sty2, prm2, prepared)
    assert out2.shape == (B2, 1), out2.shape
    assert jnp.allclose(out2, ref2, atol=1e-2, rtol=1e-2), (out2, ref2)

    print("KERNEL_OK")
</pallas_src>

<mosaic_0001>
module attributes {stable_mosaic.version = 11 : i64} {
  func.func @_discriminator_kernel(%arg0: i32, %arg1: memref<8x768xbf16, #tpu.memory_space<vmem>>, %arg2: memref<8x26xbf16, #tpu.memory_space<vmem>>, %arg3: memref<8x384xbf16, #tpu.memory_space<vmem>>, %arg4: memref<768x512xbf16, #tpu.memory_space<vmem>>, %arg5: memref<26x512xbf16, #tpu.memory_space<vmem>>, %arg6: memref<384x512xbf16, #tpu.memory_space<vmem>>, %arg7: memref<1x512xf32, #tpu.memory_space<vmem>>, %arg8: memref<512x256xbf16, #tpu.memory_space<vmem>>, %arg9: memref<1x256xf32, #tpu.memory_space<vmem>>, %arg10: memref<256x128xbf16, #tpu.memory_space<vmem>>, %arg11: memref<1x128xf32, #tpu.memory_space<vmem>>, %arg12: memref<8x128xf32, #tpu.memory_space<vmem>>) attributes {dimension_semantics = [#tpu.dimension_semantics<parallel>], iteration_bounds = array<i64: 1>, scalar_prefetch = 0 : i64, scratch_operands = 0 : i64, tpu.core_type = #tpu.core_type<tc>, window_params = [{transform_indices = @transform_0, window_bounds = array<i64: 8, 768>}, {transform_indices = @transform_1, window_bounds = array<i64: 8, 26>}, {transform_indices = @transform_2, window_bounds = array<i64: 8, 384>}, {pipeline_mode = #tpu.pipeline_mode<synchronous>, transform_indices = @transform_3, window_bounds = array<i64: 768, 512>}, {pipeline_mode = #tpu.pipeline_mode<synchronous>, transform_indices = @transform_4, window_bounds = array<i64: 26, 512>}, {pipeline_mode = #tpu.pipeline_mode<synchronous>, transform_indices = @transform_5, window_bounds = array<i64: 384, 512>}, {pipeline_mode = #tpu.pipeline_mode<synchronous>, transform_indices = @transform_6, window_bounds = array<i64: 1, 512>}, {pipeline_mode = #tpu.pipeline_mode<synchronous>, transform_indices = @transform_7, window_bounds = array<i64: 512, 256>}, {pipeline_mode = #tpu.pipeline_mode<synchronous>, transform_indices = @transform_8, window_bounds = array<i64: 1, 256>}, {pipeline_mode = #tpu.pipeline_mode<synchronous>, transform_indices = @transform_9, window_bounds = array<i64: 256, 128>}, {pipeline_mode = #tpu.pipeline_mode<synchronous>, transform_indices = @transform_10, window_bounds = array<i64: 1, 128>}, {transform_indices = @transform_11, window_bounds = array<i64: 8, 128>}]} {
    %c0 = arith.constant 0 : index
    %c0_0 = arith.constant 0 : index
    %0 = vector.load %arg1[%c0, %c0_0] : memref<8x768xbf16, #tpu.memory_space<vmem>>, vector<8x768xbf16>
    %c0_1 = arith.constant 0 : index
    %c0_2 = arith.constant 0 : index
    %1 = vector.load %arg4[%c0_1, %c0_2] : memref<768x512xbf16, #tpu.memory_space<vmem>>, vector<768x512xbf16>
    %cst = arith.constant dense<0.000000e+00> : vector<8x512xf32>
    %2 = tpu.matmul %0, %1, %cst {dimension_numbers = #tpu.dot_dimension_numbers<[1], [0], [0], [1], [0, 0, 1, 1], [], []>} : vector<8x768xbf16>, vector<768x512xbf16>, vector<8x512xf32> -> vector<8x512xf32>
    %c0_3 = arith.constant 0 : index
    %c0_4 = arith.constant 0 : index
    %3 = vector.load %arg2[%c0_3, %c0_4] : memref<8x26xbf16, #tpu.memory_space<vmem>>, vector<8x26xbf16>
    %c0_5 = arith.constant 0 : index
    %c0_6 = arith.constant 0 : index
    %4 = vector.load %arg5[%c0_5, %c0_6] : memref<26x512xbf16, #tpu.memory_space<vmem>>, vector<26x512xbf16>
    %cst_7 = arith.constant dense<0.000000e+00> : vector<8x512xf32>
    %5 = tpu.matmul %3, %4, %cst_7 {dimension_numbers = #tpu.dot_dimension_numbers<[1], [0], [0], [1], [0, 0, 1, 1], [], []>} : vector<8x26xbf16>, vector<26x512xbf16>, vector<8x512xf32> -> vector<8x512xf32>
    %6 = arith.addf %2, %5 : vector<8x512xf32>
    %c0_8 = arith.constant 0 : index
    %c0_9 = arith.constant 0 : index
    %7 = vector.load %arg3[%c0_8, %c0_9] : memref<8x384xbf16, #tpu.memory_space<vmem>>, vector<8x384xbf16>
    %c0_10 = arith.constant 0 : index
    %c0_11 = arith.constant 0 : index
    %8 = vector.load %arg6[%c0_10, %c0_11] : memref<384x512xbf16, #tpu.memory_space<vmem>>, vector<384x512xbf16>
    %cst_12 = arith.constant dense<0.000000e+00> : vector<8x512xf32>
    %9 = tpu.matmul %7, %8, %cst_12 {dimension_numbers = #tpu.dot_dimension_numbers<[1], [0], [0], [1], [0, 0, 1, 1], [], []>} : vector<8x384xbf16>, vector<384x512xbf16>, vector<8x512xf32> -> vector<8x512xf32>
    %10 = arith.addf %6, %9 : vector<8x512xf32>
    %c0_13 = arith.constant 0 : index
    %c0_14 = arith.constant 0 : index
    %11 = vector.load %arg7[%c0_13, %c0_14] : memref<1x512xf32, #tpu.memory_space<vmem>>, vector<1x512xf32>
    %12 = vector.broadcast %11 : vector<1x512xf32> to vector<8x512xf32>
    %13 = arith.addf %10, %12 : vector<8x512xf32>
    %cst_15 = arith.constant 2.000000e-01 : f32
    %14 = vector.broadcast %cst_15 : f32 to vector<8x512xf32>
    %15 = arith.mulf %14, %13 : vector<8x512xf32>
    %16 = arith.maximumf %13, %15 : vector<8x512xf32>
    %17 = arith.truncf %16 : vector<8x512xf32> to vector<8x512xbf16>
    %c0_16 = arith.constant 0 : index
    %c0_17 = arith.constant 0 : index
    %18 = vector.load %arg8[%c0_16, %c0_17] : memref<512x256xbf16, #tpu.memory_space<vmem>>, vector<512x256xbf16>
    %cst_18 = arith.constant dense<0.000000e+00> : vector<8x256xf32>
    %19 = tpu.matmul %17, %18, %cst_18 {dimension_numbers = #tpu.dot_dimension_numbers<[1], [0], [0], [1], [0, 0, 1, 1], [], []>} : vector<8x512xbf16>, vector<512x256xbf16>, vector<8x256xf32> -> vector<8x256xf32>
    %c0_19 = arith.constant 0 : index
    %c0_20 = arith.constant 0 : index
    %20 = vector.load %arg9[%c0_19, %c0_20] : memref<1x256xf32, #tpu.memory_space<vmem>>, vector<1x256xf32>
    %21 = vector.broadcast %20 : vector<1x256xf32> to vector<8x256xf32>
    %22 = arith.addf %19, %21 : vector<8x256xf32>
    %cst_21 = arith.constant 2.000000e-01 : f32
    %23 = vector.broadcast %cst_21 : f32 to vector<8x256xf32>
    %24 = arith.mulf %23, %22 : vector<8x256xf32>
    %25 = arith.maximumf %22, %24 : vector<8x256xf32>
    %26 = arith.truncf %25 : vector<8x256xf32> to vector<8x256xbf16>
    %c0_22 = arith.constant 0 : index
    %c0_23 = arith.constant 0 : index
    %27 = vector.load %arg10[%c0_22, %c0_23] : memref<256x128xbf16, #tpu.memory_space<vmem>>, vector<256x128xbf16>
    %cst_24 = arith.constant dense<0.000000e+00> : vector<8x128xf32>
    %28 = tpu.matmul %26, %27, %cst_24 {dimension_numbers = #tpu.dot_dimension_numbers<[1], [0], [0], [1], [0, 0, 1, 1], [], []>} : vector<8x256xbf16>, vector<256x128xbf16>, vector<8x128xf32> -> vector<8x128xf32>
    %c0_25 = arith.constant 0 : index
    %c0_26 = arith.constant 0 : index
    %29 = vector.load %arg11[%c0_25, %c0_26] : memref<1x128xf32, #tpu.memory_space<vmem>>, vector<1x128xf32>
    %30 = vector.broadcast %29 : vector<1x128xf32> to vector<8x128xf32>
    %31 = arith.addf %28, %30 : vector<8x128xf32>
    %c0_27 = arith.constant 0 : index
    %c0_28 = arith.constant 0 : index
    %32 = vector.load %arg12[%c0_27, %c0_28] : memref<8x128xf32, #tpu.memory_space<vmem>>, vector<8x128xf32>
    tpu.vector_store %arg12[%c0_27, %c0_28], %31 {strides = array<i32>} : memref<8x128xf32, #tpu.memory_space<vmem>>, vector<8x128xf32>,
    return
  }
  func.func @transform_0(%arg0: i32) -> (i32, i32) {
    %c0_i32 = arith.constant 0 : i32
    %c0_i32_0 = arith.constant 0 : i32
    return %arg0, %c0_i32 : i32, i32
  }
  func.func @transform_1(%arg0: i32) -> (i32, i32) {
    %c0_i32 = arith.constant 0 : i32
    %c0_i32_0 = arith.constant 0 : i32
    return %arg0, %c0_i32 : i32, i32
  }
  func.func @transform_2(%arg0: i32) -> (i32, i32) {
    %c0_i32 = arith.constant 0 : i32
    %c0_i32_0 = arith.constant 0 : i32
    return %arg0, %c0_i32 : i32, i32
  }
  func.func @transform_3(%arg0: i32) -> (i32, i32) {
    %c0_i32 = arith.constant 0 : i32
    %c0_i32_0 = arith.constant 0 : i32
    %c0_i32_1 = arith.constant 0 : i32
    return %c0_i32, %c0_i32_0 : i32, i32
  }
  func.func @transform_4(%arg0: i32) -> (i32, i32) {
    %c0_i32 = arith.constant 0 : i32
    %c0_i32_0 = arith.constant 0 : i32
    %c0_i32_1 = arith.constant 0 : i32
    return %c0_i32, %c0_i32_0 : i32, i32
  }
  func.func @transform_5(%arg0: i32) -> (i32, i32) {
    %c0_i32 = arith.constant 0 : i32
    %c0_i32_0 = arith.constant 0 : i32
    %c0_i32_1 = arith.constant 0 : i32
    return %c0_i32, %c0_i32_0 : i32, i32
  }
  func.func @transform_6(%arg0: i32) -> (i32, i32) {
    %c0_i32 = arith.constant 0 : i32
    %c0_i32_0 = arith.constant 0 : i32
    %c0_i32_1 = arith.constant 0 : i32
    return %c0_i32, %c0_i32_0 : i32, i32
  }
  func.func @transform_7(%arg0: i32) -> (i32, i32) {
    %c0_i32 = arith.constant 0 : i32
    %c0_i32_0 = arith.constant 0 : i32
    %c0_i32_1 = arith.constant 0 : i32
    return %c0_i32, %c0_i32_0 : i32, i32
  }
  func.func @transform_8(%arg0: i32) -> (i32, i32) {
    %c0_i32 = arith.constant 0 : i32
    %c0_i32_0 = arith.constant 0 : i32
    %c0_i32_1 = arith.constant 0 : i32
    return %c0_i32, %c0_i32_0 : i32, i32
  }
  func.func @transform_9(%arg0: i32) -> (i32, i32) {
    %c0_i32 = arith.constant 0 : i32
    %c0_i32_0 = arith.constant 0 : i32
    %c0_i32_1 = arith.constant 0 : i32
    return %c0_i32, %c0_i32_0 : i32, i32
  }
  func.func @transform_10(%arg0: i32) -> (i32, i32) {
    %c0_i32 = arith.constant 0 : i32
    %c0_i32_0 = arith.constant 0 : i32
    %c0_i32_1 = arith.constant 0 : i32
    return %c0_i32, %c0_i32_0 : i32, i32
  }
  func.func @transform_11(%arg0: i32) -> (i32, i32) {
    %c0_i32 = arith.constant 0 : i32
    %c0_i32_0 = arith.constant 0 : i32
    return %arg0, %c0_i32 : i32, i32
  }
}

</mosaic_0001>

<llo_original>
// kernel: tpu_custom_call.1
$region0: #{tpu_custom_call.1}
  #allocation0 [shape = 'u32[]', space=smem, size = 0x4, offset = 0x4, fixed_abs, tag = 'smem constant byte address 0x4 - core index']
  #allocation1 [shape = 'u32[144,128]{1,0:T(1,128)}', space=vmem, size = 0x12000, scoped, tag = 'internal scratch']
  %s0 = inlined_call_operand.hbm [shape: bf16[8,768], index: 0, kind: input, shape index: {}]
  %s1 = inlined_call_operand.hbm [shape: bf16[8,26], index: 1, kind: input, shape index: {}]
  %s2 = inlined_call_operand.hbm [shape: bf16[8,384], index: 2, kind: input, shape index: {}]
  %s3 = inlined_call_operand.hbm [shape: bf16[768,512], index: 3, kind: input, shape index: {}]
  %s4 = inlined_call_operand.hbm [shape: bf16[26,512], index: 4, kind: input, shape index: {}]
  %s5 = inlined_call_operand.hbm [shape: bf16[384,512], index: 5, kind: input, shape index: {}]
  %s6 = inlined_call_operand.vmem [shape: f32[1,512], index: 6, kind: input, shape index: {}]
  %s7 = inlined_call_operand.hbm [shape: bf16[512,256], index: 7, kind: input, shape index: {}]
  %s8 = inlined_call_operand.vmem [shape: f32[1,256], index: 8, kind: input, shape index: {}]
  %s9 = inlined_call_operand.hbm [shape: bf16[256,128], index: 9, kind: input, shape index: {}]
  %s10 = inlined_call_operand.vmem [shape: f32[1,128], index: 10, kind: input, shape index: {}]
  %s11 = inlined_call_operand.hbm [shape: f32[8,128], index: 11, kind: output, shape index: {}]
  %s12 = sld [smem:[#allocation0]]
  $region86: #{tpu_custom_call.1} parent=0
    _
  %s14 = ssub.s32 1, %s12
  %s15 = scalar_select 0, %s14, %s12
  $region1: #{tpu_custom_call.1} parent=0
    #allocation2 [shape = 'u8[12288]{0}', space=vmem, size = 0x3000, scoped, tag = 'input window, operand 0, single buffered']
    #allocation3 [shape = 's32[1]{0}', space=sflag, size = 0x4, scoped, tag = 'scoped memory for tpu_custom_call.1']
    #allocation4 [shape = 's32[1]{0}', space=sflag, size = 0x4, scoped, tag = 'scoped memory for tpu_custom_call.1']
    #allocation5 [shape = 'u8[2048]{0}', space=vmem, size = 0x800, scoped, tag = 'input window, operand 1, single buffered']
    #allocation6 [shape = 's32[1]{0}', space=sflag, size = 0x4, scoped, tag = 'scoped memory for tpu_custom_call.1']
    #allocation7 [shape = 'u8[6144]{0}', space=vmem, size = 0x1800, scoped, tag = 'input window, operand 2, single buffered']
    #allocation8 [shape = 'u8[786432]{0}', space=vmem, size = 0xc0000, scoped, tag = 'input window, operand 3, single buffered']
    #allocation9 [shape = 's32[1]{0}', space=sflag, size = 0x4, scoped, tag = 'scoped memory for tpu_custom_call.1']
    #allocation10 [shape = 'u8[32768]{0}', space=vmem, size = 0x8000, scoped, tag = 'input window, operand 4, single buffered']
    #allocation11 [shape = 'u8[393216]{0}', space=vmem, size = 0x60000, scoped, tag = 'input window, operand 5, single buffered']
    #allocation12 [shape = 's32[1]{0}', space=sflag, size = 0x4, scoped, tag = 'scoped memory for tpu_custom_call.1']
    #allocation13 [shape = 'u8[262144]{0}', space=vmem, size = 0x40000, scoped, tag = 'input window, operand 7, single buffered']
    #allocation14 [shape = 'u8[65536]{0}', space=vmem, size = 0x10000, scoped, tag = 'input window, operand 9, single buffered']
    #allocation15 [shape = 's32[1]{0}', space=sflag, size = 0x4, scoped, tag = 'scoped memory for tpu_custom_call.1']
    #allocation16 [shape = 'u8[4096]{0}', space=vmem, size = 0x1000, scoped, tag = 'output window, operand 0, single buffered']
    %16 = vsyncpa [#allocation3], 0
    %17 = vsyncpa [#allocation6], 0
    %18 = vsyncpa [#allocation9], 0
    %19 = vsyncpa [#allocation12], 0
    %20 = vsyncpa [#allocation15], 0
    %21 = vsyncpa [#allocation4], 0
    // Predicated region
    $region2: #{tpu_custom_call.1} parent=1 // pred_check
      _
    $region3: #{tpu_custom_call.1} parent=1 // pred_check_branch
      %23 = sbr.rel (0) target = $region5
    $region4: #{tpu_custom_call.1} parent=1 // pred_region
      %s25 = ssub.s32 384, 384
      %26 = vsyncadd [#allocation3], %s25
      %s28 = sshll.u32 [#allocation2], 4
      %s29 = int_to_ptr.vmem [resolvable:$true] %s28
      %31 = dma.hbm_to_vmem [thread:$0]  %s0, 384, %s29, [#allocation3]
    $region5: #{tpu_custom_call.1} parent=1 // pred_fallthru
      _
    // Predicated region
    $region6: #{tpu_custom_call.1} parent=1 // pred_check
      _
    $region7: #{tpu_custom_call.1} parent=1 // pred_check_branch
      %33 = sbr.rel (0) target = $region9
    $region8: #{tpu_custom_call.1} parent=1 // pred_region
      %s35 = ssub.s32 64, 64
      %36 = vsyncadd [#allocation6], %s35
      %s38 = sshll.u32 [#allocation5], 4
      %s39 = int_to_ptr.vmem [resolvable:$true] %s38
      %41 = dma.hbm_to_vmem [thread:$0]  %s1, 64, %s39, [#allocation6]
    $region9: #{tpu_custom_call.1} parent=1 // pred_fallthru
      _
    // Predicated region
    $region10: #{tpu_custom_call.1} parent=1 // pred_check
      _
    $region11: #{tpu_custom_call.1} parent=1 // pred_check_branch
      %43 = sbr.rel (0) target = $region13
    $region12: #{tpu_custom_call.1} parent=1 // pred_region
      %s45 = ssub.s32 192, 192
      %46 = vsyncadd [#allocation6], %s45
      %s48 = sshll.u32 [#allocation7], 4
      %s49 = int_to_ptr.vmem [resolvable:$true] %s48
      %51 = dma.hbm_to_vmem [thread:$0]  %s2, 192, %s49, [#allocation6]
    $region13: #{tpu_custom_call.1} parent=1 // pred_fallthru
      _
    // Predicated region
    $region14: #{tpu_custom_call.1} parent=1 // pred_check
      _
    $region15: #{tpu_custom_call.1} parent=1 // pred_check_branch
      %53 = sbr.rel (0) target = $region17
    $region16: #{tpu_custom_call.1} parent=1 // pred_region
      %s55 = ssub.s32 24576, 24576
      %56 = vsyncadd [#allocation9], %s55
      %s57 = sshll.u32 [#allocation8], 4
      %s58 = int_to_ptr.vmem [resolvable:$true] %s57
      %63 = dma.hbm_to_vmem [thread:$0]  %s3, 24576, %s58, [#allocation9], 256, 256, 16
    $region17: #{tpu_custom_call.1} parent=1 // pred_fallthru
      _
    // Predicated region
    $region18: #{tpu_custom_call.1} parent=1 // pred_check
      _
    $region19: #{tpu_custom_call.1} parent=1 // pred_check_branch
      %65 = sbr.rel (0) target = $region21
    $region20: #{tpu_custom_call.1} parent=1 // pred_region
      %s67 = ssub.s32 1024, 1024
      %68 = vsyncadd [#allocation9], %s67
      %s69 = sshll.u32 [#allocation10], 4
      %s70 = int_to_ptr.vmem [resolvable:$true] %s69
      %75 = dma.hbm_to_vmem [thread:$0]  %s4, 1024, %s70, [#allocation9], 256, 256, 16
    $region21: #{tpu_custom_call.1} parent=1 // pred_fallthru
      _
    // Predicated region
    $region22: #{tpu_custom_call.1} parent=1 // pred_check
      _
    $region23: #{tpu_custom_call.1} parent=1 // pred_check_branch
      %77 = sbr.rel (0) target = $region25
    $region24: #{tpu_custom_call.1} parent=1 // pred_region
      %s79 = ssub.s32 12288, 12288
      %80 = vsyncadd [#allocation12], %s79
      %s81 = sshll.u32 [#allocation11], 4
      %s82 = int_to_ptr.vmem [resolvable:$true] %s81
      %87 = dma.hbm_to_vmem [thread:$0]  %s5, 12288, %s82, [#allocation12], 256, 256, 16
    $region25: #{tpu_custom_call.1} parent=1 // pred_fallthru
      _
    // Predicated region
    $region26: #{tpu_custom_call.1} parent=1 // pred_check
      _
    $region27: #{tpu_custom_call.1} parent=1 // pred_check_branch
      %89 = sbr.rel (0) target = $region29
    $region28: #{tpu_custom_call.1} parent=1 // pred_region
      _
    $region29: #{tpu_custom_call.1} parent=1 // pred_fallthru
      _
    // Predicated region
    $region30: #{tpu_custom_call.1} parent=1 // pred_check
      _
    $region31: #{tpu_custom_call.1} parent=1 // pred_check_branch
      %91 = sbr.rel (0) target = $region33
    $region32: #{tpu_custom_call.1} parent=1 // pred_region
      %s93 = ssub.s32 8192, 8192
      %94 = vsyncadd [#allocation12], %s93
      %s95 = sshll.u32 [#allocation13], 4
      %s96 = int_to_ptr.vmem [resolvable:$true] %s95
      %101 = dma.hbm_to_vmem [thread:$0]  %s7, 8192, %s96, [#allocation12], 128, 128, 8
    $region33: #{tpu_custom_call.1} parent=1 // pred_fallthru
      _
    // Predicated region
    $region34: #{tpu_custom_call.1} parent=1 // pred_check
      _
    $region35: #{tpu_custom_call.1} parent=1 // pred_check_branch
      %103 = sbr.rel (0) target = $region37
    $region36: #{tpu_custom_call.1} parent=1 // pred_region
      _
    $region37: #{tpu_custom_call.1} parent=1 // pred_fallthru
      _
    // Predicated region
    $region38: #{tpu_custom_call.1} parent=1 // pred_check
      _
    $region39: #{tpu_custom_call.1} parent=1 // pred_check_branch
      %105 = sbr.rel (0) target = $region41
    $region40: #{tpu_custom_call.1} parent=1 // pred_region
      %s107 = ssub.s32 2048, 2048
      %108 = vsyncadd [#allocation15], %s107
      %s109 = sshll.u32 [#allocation14], 4
      %s110 = int_to_ptr.vmem [resolvable:$true] %s109
      %115 = dma.hbm_to_vmem [thread:$0]  %s9, 2048, %s110, [#allocation15], 64, 64, 4
    $region41: #{tpu_custom_call.1} parent=1 // pred_fallthru
      _
    // Predicated region
    $region42: #{tpu_custom_call.1} parent=1 // pred_check
      _
    $region43: #{tpu_custom_call.1} parent=1 // pred_check_branch
      %117 = sbr.rel (0) target = $region45
    $region44: #{tpu_custom_call.1} parent=1 // pred_region
      _
    $region45: #{tpu_custom_call.1} parent=1 // pred_fallthru
      _
    // Predicated region
    $region46: #{tpu_custom_call.1} parent=1 // pred_check
      _
    $region47: #{tpu_custom_call.1} parent=1 // pred_check_branch
      %119 = sbr.rel (0) target = $region49
    $region48: #{tpu_custom_call.1} parent=1 // pred_region
      %120 = dma.done [#allocation3], 384
    $region49: #{tpu_custom_call.1} parent=1 // pred_fallthru
      _
    // Predicated region
    $region50: #{tpu_custom_call.1} parent=1 // pred_check
      _
    $region51: #{tpu_custom_call.1} parent=1 // pred_check_branch
      %122 = sbr.rel (0) target = $region53
    $region52: #{tpu_custom_call.1} parent=1 // pred_region
      %123 = dma.done [#allocation6], 64
    $region53: #{tpu_custom_call.1} parent=1 // pred_fallthru
      _
    // Predicated region
    $region54: #{tpu_custom_call.1} parent=1 // pred_check
      _
    $region55: #{tpu_custom_call.1} parent=1 // pred_check_branch
      %125 = sbr.rel (0) target = $region57
    $region56: #{tpu_custom_call.1} parent=1 // pred_region
      %126 = dma.done [#allocation6], 192
    $region57: #{tpu_custom_call.1} parent=1 // pred_fallthru
      _
    // Predicated region
    $region58: #{tpu_custom_call.1} parent=1 // pred_check
      _
    $region59: #{tpu_custom_call.1} parent=1 // pred_check_branch
      %128 = sbr.rel (0) target = $region61
    $region60: #{tpu_custom_call.1} parent=1 // pred_region
      %129 = dma.done [#allocation9], 24576
    $region61: #{tpu_custom_call.1} parent=1 // pred_fallthru
      _
    // Predicated region
    $region62: #{tpu_custom_call.1} parent=1 // pred_check
      _
    $region63: #{tpu_custom_call.1} parent=1 // pred_check_branch
      %131 = sbr.rel (0) target = $region65
    $region64: #{tpu_custom_call.1} parent=1 // pred_region
      %132 = dma.done [#allocation9], 1024
    $region65: #{tpu_custom_call.1} parent=1 // pred_fallthru
      _
    // Predicated region
    $region66: #{tpu_custom_call.1} parent=1 // pred_check
      _
    $region67: #{tpu_custom_call.1} parent=1 // pred_check_branch
      %134 = sbr.rel (0) target = $region69
    $region68: #{tpu_custom_call.1} parent=1 // pred_region
      %135 = dma.done [#allocation12], 12288
    $region69: #{tpu_custom_call.1} parent=1 // pred_fallthru
      _
    // Predicated region
    $region70: #{tpu_custom_call.1} parent=1 // pred_check
      _
    $region71: #{tpu_custom_call.1} parent=1 // pred_check_branch
      %137 = sbr.rel (0) target = $region73
    $region72: #{tpu_custom_call.1} parent=1 // pred_region
      %138 = dma.done [#allocation12], 8192
    $region73: #{tpu_custom_call.1} parent=1 // pred_fallthru
      _
    // Predicated region
    $region74: #{tpu_custom_call.1} parent=1 // pred_check
      _
    $region75: #{tpu_custom_call.1} parent=1 // pred_check_branch
      %140 = sbr.rel (0) target = $region77
    $region76: #{tpu_custom_call.1} parent=1 // pred_region
      %141 = dma.done [#allocation15], 2048
    $region77: #{tpu_custom_call.1} parent=1 // pred_fallthru
      _
    %v143 = vld [vmem:[#allocation2] sm:$0xff]
    %v144 = vld [vmem:[#allocation2 + $0x8] sm:$0xff]
    %v145 = vld [vmem:[#allocation2 + $0x10] sm:$0xff]
    %v146 = vld [vmem:[#allocation8] sm:$0xff]
    %v147 = vld [vmem:[#allocation8 + $0x8] sm:$0xff]
    %v148 = vld [vmem:[#allocation8 + $0x10] sm:$0xff]
    %v149 = vld [vmem:[#allocation8 + $0x18] sm:$0xff]
    %v150 = vld [vmem:[#allocation8 + $0x20] sm:$0xff]
    %v151 = vld [vmem:[#allocation8 + $0x28] sm:$0xff]
    %v152 = vld [vmem:[#allocation8 + $0x30] sm:$0xff]
    %v153 = vld [vmem:[#allocation8 + $0x38] sm:$0xff]
    %v154 = vld [vmem:[#allocation8 + $0x40] sm:$0xff]
    %v155 = vld [vmem:[#allocation8 + $0x48] sm:$0xff]
    %v156 = vld [vmem:[#allocation8 + $0x50] sm:$0xff]
    %v157 = vld [vmem:[#allocation8 + $0x58] sm:$0xff]
    %v158 = vld [vmem:[#allocation8 + $0x60] sm:$0xff]
    %v159 = vld [vmem:[#allocation8 + $0x68] sm:$0xff]
    %v160 = vld [vmem:[#allocation8 + $0x70] sm:$0xff]
    %v161 = vld [vmem:[#allocation8 + $0x78] sm:$0xff]
    %v162 = vld [vmem:[#allocation8 + $0x80] sm:$0xff]
    %v163 = vld [vmem:[#allocation8 + $0x88] sm:$0xff]
    %v164 = vld [vmem:[#allocation8 + $0x90] sm:$0xff]
    %v165 = vld [vmem:[#allocation8 + $0x98] sm:$0xff]
    %v166 = vld [vmem:[#allocation8 + $0xa0] sm:$0xff]
    %v167 = vld [vmem:[#allocation8 + $0xa8] sm:$0xff]
    %v168 = vld [vmem:[#allocation8 + $0xb0] sm:$0xff]
    %v169 = vld [vmem:[#allocation8 + $0xb8] sm:$0xff]
    %v170 = vld [vmem:[#allocation8 + $0xc0] sm:$0xff]
    %v171 = vld [vmem:[#allocation8 + $0xc8] sm:$0xff]
    %v172 = vld [vmem:[#allocation8 + $0xd0] sm:$0xff]
    %v173 = vld [vmem:[#allocation8 + $0xd8] sm:$0xff]
    %v174 = vld [vmem:[#allocation8 + $0xe0] sm:$0xff]
    %v175 = vld [vmem:[#allocation8 + $0xe8] sm:$0xff]
    %v176 = vld [vmem:[#allocation8 + $0xf0] sm:$0xff]
    %v177 = vld [vmem:[#allocation8 + $0xf8] sm:$0xff]
    %v178 = vld [vmem:[#allocation8 + $0x100] sm:$0xff]
    %v179 = vld [vmem:[#allocation8 + $0x108] sm:$0xff]
    %v180 = vld [vmem:[#allocation8 + $0x110] sm:$0xff]
    %v181 = vld [vmem:[#allocation8 + $0x118] sm:$0xff]
    %v182 = vld [vmem:[#allocation8 + $0x120] sm:$0xff]
    %v183 = vld [vmem:[#allocation8 + $0x128] sm:$0xff]
    %v184 = vld [vmem:[#allocation8 + $0x130] sm:$0xff]
    %v185 = vld [vmem:[#allocation8 + $0x138] sm:$0xff]
    %v186 = vld [vmem:[#allocation8 + $0x140] sm:$0xff]
    %v187 = vld [vmem:[#allocation8 + $0x148] sm:$0xff]
    %v188 = vld [vmem:[#allocation8 + $0x150] sm:$0xff]
    %v189 = vld [vmem:[#allocation8 + $0x158] sm:$0xff]
    %v190 = vld [vmem:[#allocation8 + $0x160] sm:$0xff]
    %v191 = vld [vmem:[#allocation8 + $0x168] sm:$0xff]
    %v192 = vld [vmem:[#allocation8 + $0x170] sm:$0xff]
    %v193 = vld [vmem:[#allocation8 + $0x178] sm:$0xff]
    %v194 = vld [vmem:[#allocation8 + $0x180] sm:$0xff]
    %v195 = vld [vmem:[#allocation8 + $0x188] sm:$0xff]
    %v196 = vld [vmem:[#allocation8 + $0x190] sm:$0xff]
    %v197 = vld [vmem:[#allocation8 + $0x198] sm:$0xff]
    %v198 = vld [vmem:[#allocation8 + $0x1a0] sm:$0xff]
    %v199 = vld [vmem:[#allocation8 + $0x1a8] sm:$0xff]
    %v200 = vld [vmem:[#allocation8 + $0x1b0] sm:$0xff]
    %v201 = vld [vmem:[#allocation8 + $0x1b8] sm:$0xff]
    %v202 = vld [vmem:[#allocation8 + $0x1c0] sm:$0xff]
    %v203 = vld [vmem:[#allocation8 + $0x1c8] sm:$0xff]
    %v204 = vld [vmem:[#allocation8 + $0x1d0] sm:$0xff]
    %v205 = vld [vmem:[#allocation8 + $0x1d8] sm:$0xff]
    %v206 = vld [vmem:[#allocation8 + $0x1e0] sm:$0xff]
    %v207 = vld [vmem:[#allocation8 + $0x1e8] sm:$0xff]
    %v208 = vld [vmem:[#allocation8 + $0x1f0] sm:$0xff]
    %v209 = vld [vmem:[#allocation8 + $0x1f8] sm:$0xff]
    %v210 = vld [vmem:[#allocation8 + $0x200] sm:$0xff]
    %v211 = vld [vmem:[#allocation8 + $0x208] sm:$0xff]
    %v212 = vld [vmem:[#allocation8 + $0x210] sm:$0xff]
    %v213 = vld [vmem:[#allocation8 + $0x218] sm:$0xff]
    %v214 = vld [vmem:[#allocation8 + $0x220] sm:$0xff]
    %v215 = vld [vmem:[#allocation8 + $0x228] sm:$0xff]
    %v216 = vld [vmem:[#allocation8 + $0x230] sm:$0xff]
    %v217 = vld [vmem:[#allocation8 + $0x238] sm:$0xff]
    %v218 = vld [vmem:[#allocation8 + $0x240] sm:$0xff]
    %v219 = vld [vmem:[#allocation8 + $0x248] sm:$0xff]
    %v220 = vld [vmem:[#allocation8 + $0x250] sm:$0xff]
    %v221 = vld [vmem:[#allocation8 + $0x258] sm:$0xff]
    %v222 = vld [vmem:[#allocation8 + $0x260] sm:$0xff]
    %v223 = vld [vmem:[#allocation8 + $0x268] sm:$0xff]
    %v224 = vld [vmem:[#allocation8 + $0x270] sm:$0xff]
    %v225 = vld [vmem:[#allocation8 + $0x278] sm:$0xff]
    %v226 = vld [vmem:[#allocation8 + $0x280] sm:$0xff]
    %v227 = vld [vmem:[#allocation8 + $0x288] sm:$0xff]
    %v228 = vld [vmem:[#allocation8 + $0x290] sm:$0xff]
    %v229 = vld [vmem:[#allocation8 + $0x298] sm:$0xff]
    %v230 = vld [vmem:[#allocation8 + $0x2a0] sm:$0xff]
    %v231 = vld [vmem:[#allocation8 + $0x2a8] sm:$0xff]
    %v232 = vld [vmem:[#allocation8 + $0x2b0] sm:$0xff]
    %v233 = vld [vmem:[#allocation8 + $0x2b8] sm:$0xff]
    %v234 = vld [vmem:[#allocation8 + $0x2c0] sm:$0xff]
    %v235 = vld [vmem:[#allocation8 + $0x2c8] sm:$0xff]
    %v236 = vld [vmem:[#allocation8 + $0x2d0] sm:$0xff]
    %v237 = vld [vmem:[#allocation8 + $0x2d8] sm:$0xff]
    %v238 = vld [vmem:[#allocation8 + $0x2e0] sm:$0xff]
    %v239 = vld [vmem:[#allocation8 + $0x2e8] sm:$0xff]
    %v240 = vld [vmem:[#allocation8 + $0x2f0] sm:$0xff]
    %v241 = vld [vmem:[#allocation8 + $0x2f8] sm:$0xff]
    %v242 = vld [vmem:[#allocation8 + $0x300] sm:$0xff]
    %v243 = vld [vmem:[#allocation8 + $0x308] sm:$0xff]
    %v244 = vld [vmem:[#allocation8 + $0x310] sm:$0xff]
    %v245 = vld [vmem:[#allocation8 + $0x318] sm:$0xff]
    %v246 = vld [vmem:[#allocation8 + $0x320] sm:$0xff]
    %v247 = vld [vmem:[#allocation8 + $0x328] sm:$0xff]
    %v248 = vld [vmem:[#allocation8 + $0x330] sm:$0xff]
    %v249 = vld [vmem:[#allocation8 + $0x338] sm:$0xff]
    %v250 = vld [vmem:[#allocation8 + $0x340] sm:$0xff]
    %v251 = vld [vmem:[#allocation8 + $0x348] sm:$0xff]
    %v252 = vld [vmem:[#allocation8 + $0x350] sm:$0xff]
    %v253 = vld [vmem:[#allocation8 + $0x358] sm:$0xff]
    %v254 = vld [vmem:[#allocation8 + $0x360] sm:$0xff]
    %v255 = vld [vmem:[#allocation8 + $0x368] sm:$0xff]
    %v256 = vld [vmem:[#allocation8 + $0x370] sm:$0xff]
    %v257 = vld [vmem:[#allocation8 + $0x378] sm:$0xff]
    %v258 = vld [vmem:[#allocation8 + $0x380] sm:$0xff]
    %v259 = vld [vmem:[#allocation8 + $0x388] sm:$0xff]
    %v260 = vld [vmem:[#allocation8 + $0x390] sm:$0xff]
    %v261 = vld [vmem:[#allocation8 + $0x398] sm:$0xff]
    %v262 = vld [vmem:[#allocation8 + $0x3a0] sm:$0xff]
    %v263 = vld [vmem:[#allocation8 + $0x3a8] sm:$0xff]
    %v264 = vld [vmem:[#allocation8 + $0x3b0] sm:$0xff]
    %v265 = vld [vmem:[#allocation8 + $0x3b8] sm:$0xff]
    %v266 = vld [vmem:[#allocation8 + $0x3c0] sm:$0xff]
    %v267 = vld [vmem:[#allocation8 + $0x3c8] sm:$0xff]
    %v268 = vld [vmem:[#allocation8 + $0x3d0] sm:$0xff]
    %v269 = vld [vmem:[#allocation8 + $0x3d8] sm:$0xff]
    %v270 = vld [vmem:[#allocation8 + $0x3e0] sm:$0xff]
    %v271 = vld [vmem:[#allocation8 + $0x3e8] sm:$0xff]
    %v272 = vld [vmem:[#allocation8 + $0x3f0] sm:$0xff]
    %v273 = vld [vmem:[#allocation8 + $0x3f8] sm:$0xff]
    %v274 = vld [vmem:[#allocation8 + $0x400] sm:$0xff]
    %v275 = vld [vmem:[#allocation8 + $0x408] sm:$0xff]
    %v276 = vld [vmem:[#allocation8 + $0x410] sm:$0xff]
    %v277 = vld [vmem:[#allocation8 + $0x418] sm:$0xff]
    %v278 = vld [vmem:[#allocation8 + $0x420] sm:$0xff]
    %v279 = vld [vmem:[#allocation8 + $0x428] sm:$0xff]
    %v280 = vld [vmem:[#allocation8 + $0x430] sm:$0xff]
    %v281 = vld [vmem:[#allocation8 + $0x438] sm:$0xff]
    %v282 = vld [vmem:[#allocation8 + $0x440] sm:$0xff]
    %v283 = vld [vmem:[#allocation8 + $0x448] sm:$0xff]
    %v284 = vld [vmem:[#allocation8 + $0x450] sm:$0xff]
    %v285 = vld [vmem:[#allocation8 + $0x458] sm:$0xff]
    %v286 = vld [vmem:[#allocation8 + $0x460] sm:$0xff]
    %v287 = vld [vmem:[#allocation8 + $0x468] sm:$0xff]
    %v288 = vld [vmem:[#allocation8 + $0x470] sm:$0xff]
    %v289 = vld [vmem:[#allocation8 + $0x478] sm:$0xff]
    %v290 = vld [vmem:[#allocation8 + $0x480] sm:$0xff]
    %v291 = vld [vmem:[#allocation8 + $0x488] sm:$0xff]
    %v292 = vld [vmem:[#allocation8 + $0x490] sm:$0xff]
    %v293 = vld [vmem:[#allocation8 + $0x498] sm:$0xff]
    %v294 = vld [vmem:[#allocation8 + $0x4a0] sm:$0xff]
    %v295 = vld [vmem:[#allocation8 + $0x4a8] sm:$0xff]
    %v296 = vld [vmem:[#allocation8 + $0x4b0] sm:$0xff]
    %v297 = vld [vmem:[#allocation8 + $0x4b8] sm:$0xff]
    %v298 = vld [vmem:[#allocation8 + $0x4c0] sm:$0xff]
    %v299 = vld [vmem:[#allocation8 + $0x4c8] sm:$0xff]
    %v300 = vld [vmem:[#allocation8 + $0x4d0] sm:$0xff]
    %v301 = vld [vmem:[#allocation8 + $0x4d8] sm:$0xff]
    %v302 = vld [vmem:[#allocation8 + $0x4e0] sm:$0xff]
    %v303 = vld [vmem:[#allocation8 + $0x4e8] sm:$0xff]
    %v304 = vld [vmem:[#allocation8 + $0x4f0] sm:$0xff]
    %v305 = vld [vmem:[#allocation8 + $0x4f8] sm:$0xff]
    %v306 = vld [vmem:[#allocation8 + $0x500] sm:$0xff]
    %v307 = vld [vmem:[#allocation8 + $0x508] sm:$0xff]
    %v308 = vld [vmem:[#allocation8 + $0x510] sm:$0xff]
    %v309 = vld [vmem:[#allocation8 + $0x518] sm:$0xff]
    %v310 = vld [vmem:[#allocation8 + $0x520] sm:$0xff]
    %v311 = vld [vmem:[#allocation8 + $0x528] sm:$0xff]
    %v312 = vld [vmem:[#allocation8 + $0x530] sm:$0xff]
    %v313 = vld [vmem:[#allocation8 + $0x538] sm:$0xff]
    %v314 = vld [vmem:[#allocation8 + $0x540] sm:$0xff]
    %v315 = vld [vmem:[#allocation8 + $0x548] sm:$0xff]
    %v316 = vld [vmem:[#allocation8 + $0x550] sm:$0xff]
    %v317 = vld [vmem:[#allocation8 + $0x558] sm:$0xff]
    %v318 = vld [vmem:[#allocation8 + $0x560] sm:$0xff]
    %v319 = vld [vmem:[#allocation8 + $0x568] sm:$0xff]
    %v320 = vld [vmem:[#allocation8 + $0x570] sm:$0xff]
    %v321 = vld [vmem:[#allocation8 + $0x578] sm:$0xff]
    %v322 = vld [vmem:[#allocation8 + $0x580] sm:$0xff]
    %v323 = vld [vmem:[#allocation8 + $0x588] sm:$0xff]
    %v324 = vld [vmem:[#allocation8 + $0x590] sm:$0xff]
    %v325 = vld [vmem:[#allocation8 + $0x598] sm:$0xff]
    %v326 = vld [vmem:[#allocation8 + $0x5a0] sm:$0xff]
    %v327 = vld [vmem:[#allocation8 + $0x5a8] sm:$0xff]
    %v328 = vld [vmem:[#allocation8 + $0x5b0] sm:$0xff]
    %v329 = vld [vmem:[#allocation8 + $0x5b8] sm:$0xff]
    %v330 = vld [vmem:[#allocation8 + $0x5c0] sm:$0xff]
    %v331 = vld [vmem:[#allocation8 + $0x5c8] sm:$0xff]
    %v332 = vld [vmem:[#allocation8 + $0x5d0] sm:$0xff]
    %v333 = vld [vmem:[#allocation8 + $0x5d8] sm:$0xff]
    %v334 = vld [vmem:[#allocation8 + $0x5e0] sm:$0xff]
    %v335 = vld [vmem:[#allocation8 + $0x5e8] sm:$0xff]
    %v336 = vld [vmem:[#allocation8 + $0x5f0] sm:$0xff]
    %v337 = vld [vmem:[#allocation8 + $0x5f8] sm:$0xff]
    %v338 = vld [vmem:[#allocation5] sm:$0xf]
    %v339 = vld [vmem:[#allocation10] sm:$0xff]
    %v340 = vld [vmem:[#allocation10 + $0x8] sm:$0xff]
    %v341 = vld [vmem:[#allocation10 + $0x10] sm:$0xff]
    %v342 = vld [vmem:[#allocation10 + $0x18] sm:$0xff]
    %v343 = vld [vmem:[#allocation10 + $0x20] sm:$0xff]
    %v344 = vld [vmem:[#allocation10 + $0x28] sm:$0xff]
    %v345 = vld [vmem:[#allocation10 + $0x30] sm:$0x11]
    %v346 = vld [vmem:[#allocation10 + $0x38] sm:$0x11]
    %v355 = vunpack.c.l.b16 %v339
    %v356 = vunpack.c.h.b16 %v339
    %v357 = vunpack.c.l.b16 %v340
    %v358 = vunpack.c.h.b16 %v340
    %v359 = vunpack.c.l.b16 %v341
    %v360 = vunpack.c.h.b16 %v341
    %v361 = vunpack.c.l.b16 %v342
    %v362 = vunpack.c.h.b16 %v342
    %v363 = vunpack.c.l.b16 %v343
    %v364 = vunpack.c.h.b16 %v343
    %v365 = vunpack.c.l.b16 %v344
    %v366 = vunpack.c.h.b16 %v344
    %v367 = vunpack.c.l.b16 %v345
    %v368 = vunpack.c.h.b16 %v345
    %v369 = vunpack.c.l.b16 %v346
    %v370 = vunpack.c.h.b16 %v346
    %v371 = vpack.c.b16 %v359, %v355
    %v372 = vpack.c.b16 %v360, %v356
    %v373 = vpack.c.b16 %v361, %v357
    %v374 = vpack.c.b16 %v362, %v358
    %v375 = vpack.c.b16 %v367, %v363
    %v376 = vpack.c.b16 %v368, %v364
    %v377 = vpack.c.b16 %v369, %v365
    %v378 = vpack.c.b16 %v370, %v366
    %vm383 = vcmask 211968
    %v385 = vsel %vm383, %v338, 0
    %vm387 = vcmask 1044480
    %v389 = vsel %vm387, %v375, 0
    %v392 = vsel %vm387, %v376, 0
    %v395 = vsel %vm387, %v377, 0
    %v398 = vsel %vm387, %v378, 0
    %400 = vmatprep.subr.bf16.mxu0 %v372
    %401 = vmatpush1.bf16.msra.mxu0 %v371
    %402 = vmatprep.subr.bf16.mxu0 %v392
    %403 = vmatpush1.bf16.msra.mxu0 %v389
    %404 = vmatprep.subr.bf16.mxu0 0
    %405 = vmatpush1.bf16.msra.mxu0 0
    %406 = vmatprep.subr.bf16.mxu0 0
    %407 = vmatpush1.bf16.msra.mxu0 0
    %408 = vmatprep.subr.bf16.mxu0 0
    %409 = vmatpush1.bf16.msra.mxu0 0
    %410 = vmatprep.subr.bf16.mxu0 0
    %411 = vmatpush1.bf16.msra.mxu0 0
    %412 = vmatprep.subr.bf16.mxu0 0
    %413 = vmatpush1.bf16.msra.mxu0 0
    %414 = vmatprep.subr.bf16.mxu0 0
    %415 = vmatpush1.bf16.msra.mxu0 0
    %416 = vmatprep.subr.bf16.mxu0 0
    %417 = vmatpush1.bf16.msra.mxu0 0
    %418 = vmatprep.subr.bf16.mxu0 0
    %419 = vmatpush1.bf16.msra.mxu0 0
    %420 = vmatprep.subr.bf16.mxu0 0
    %421 = vmatpush1.bf16.msra.mxu0 0
    %422 = vmatprep.subr.bf16.mxu0 0
    %423 = vmatpush1.bf16.msra.mxu0 0
    %424 = vmatprep.subr.bf16.mxu0 0
    %425 = vmatpush1.bf16.msra.mxu0 0
    %426 = vmatprep.subr.bf16.mxu0 0
    %427 = vmatpush1.bf16.msra.mxu0 0
    %428 = vmatprep.subr.bf16.mxu0 0
    %429 = vmatpush1.bf16.msra.mxu0 0
    %430 = vmatprep.subr.bf16.mxu0 0
    %431 = vmatpush1.bf16.msra.mxu0 0
    %432 = vmatprep.mubr.bf16.mxu0 0
    %433 = vmatmul.mubr.bf16.gmra.mrb[0].mxu0 %v385
    %v434 = vpop.f32.mrb[0].mxu0
    %v435 = vadd.f32 0.0, %v434
    %v436 = vpop.f32.mrb[0].mxu0
    %v437 = vadd.f32 0.0, %v436
    %v438 = vpop.f32.mrb[0].mxu0
    %v439 = vpop.f32.mrb[0].mxu0
    %440 = vdwg.mxu0
    %441 = vmatprep.subr.bf16.mxu0 %v374
    %442 = vmatpush1.bf16.msra.mxu0 %v373
    %443 = vmatprep.subr.bf16.mxu0 %v398
    %444 = vmatpush1.bf16.msra.mxu0 %v395
    %445 = vmatprep.subr.bf16.mxu0 0
    %446 = vmatpush1.bf16.msra.mxu0 0
    %447 = vmatprep.subr.bf16.mxu0 0
    %448 = vmatpush1.bf16.msra.mxu0 0
    %449 = vmatprep.subr.bf16.mxu0 0
    %450 = vmatpush1.bf16.msra.mxu0 0
    %451 = vmatprep.subr.bf16.mxu0 0
    %452 = vmatpush1.bf16.msra.mxu0 0
    %453 = vmatprep.subr.bf16.mxu0 0
    %454 = vmatpush1.bf16.msra.mxu0 0
    %455 = vmatprep.subr.bf16.mxu0 0
    %456 = vmatpush1.bf16.msra.mxu0 0
    %457 = vmatprep.subr.bf16.mxu0 0
    %458 = vmatpush1.bf16.msra.mxu0 0
    %459 = vmatprep.subr.bf16.mxu0 0
    %460 = vmatpush1.bf16.msra.mxu0 0
    %461 = vmatprep.subr.bf16.mxu0 0
    %462 = vmatpush1.bf16.msra.mxu0 0
    %463 = vmatprep.subr.bf16.mxu0 0
    %464 = vmatpush1.bf16.msra.mxu0 0
    %465 = vmatprep.subr.bf16.mxu0 0
    %466 = vmatpush1.bf16.msra.mxu0 0
    %467 = vmatprep.subr.bf16.mxu0 0
    %468 = vmatpush1.bf16.msra.mxu0 0
    %469 = vmatprep.subr.bf16.mxu0 0
    %470 = vmatpush1.bf16.msra.mxu0 0
    %471 = vmatprep.subr.bf16.mxu0 0
    %472 = vmatpush1.bf16.msra.mxu0 0
    %473 = vmatprep.mubr.bf16.mxu0 0
    %474 = vmatmul.mubr.bf16.gmra.mrb[0].mxu0 %v385
    %v475 = vpop.f32.mrb[0].mxu0
    %v476 = vadd.f32 0.0, %v475
    %v477 = vpop.f32.mrb[0].mxu0
    %v478 = vadd.f32 0.0, %v477
    %v479 = vpop.f32.mrb[0].mxu0
    %v480 = vpop.f32.mrb[0].mxu0
    %481 = vdwg.mxu0
    %v485 = vunpack.c.l.b16 %v143
    %v486 = vunpack.c.h.b16 %v143
    %v487 = vunpack.c.l.b16 %v144
    %v488 = vunpack.c.h.b16 %v144
    %v489 = vunpack.c.l.b16 %v145
    %v490 = vunpack.c.h.b16 %v145
    %v491 = vpack.c.b16 %v485, %v485
    %v492 = vpack.c.b16 %v486, %v486
    %v493 = vpack.c.b16 %v487, %v487
    %v494 = vpack.c.b16 %v488, %v488
    %v495 = vpack.c.b16 %v489, %v489
    %v496 = vpack.c.b16 %v490, %v490
    %v695 = vunpack.c.l.b16 %v146
    %v696 = vunpack.c.h.b16 %v146
    %v697 = vunpack.c.l.b16 %v147
    %v698 = vunpack.c.h.b16 %v147
    %v699 = vunpack.c.l.b16 %v148
    %v700 = vunpack.c.h.b16 %v148
    %v701 = vunpack.c.l.b16 %v149
    %v702 = vunpack.c.h.b16 %v149
    %v703 = vunpack.c.l.b16 %v150
    %v704 = vunpack.c.h.b16 %v150
    %v705 = vunpack.c.l.b16 %v151
    %v706 = vunpack.c.h.b16 %v151
    %v707 = vunpack.c.l.b16 %v152
    %v708 = vunpack.c.h.b16 %v152
    %v709 = vunpack.c.l.b16 %v153
    %v710 = vunpack.c.h.b16 %v153
    %v711 = vunpack.c.l.b16 %v154
    %v712 = vunpack.c.h.b16 %v154
    %v713 = vunpack.c.l.b16 %v155
    %v714 = vunpack.c.h.b16 %v155
    %v715 = vunpack.c.l.b16 %v156
    %v716 = vunpack.c.h.b16 %v156
    %v717 = vunpack.c.l.b16 %v157
    %v718 = vunpack.c.h.b16 %v157
    %v719 = vunpack.c.l.b16 %v158
    %v720 = vunpack.c.h.b16 %v158
    %v721 = vunpack.c.l.b16 %v159
    %v722 = vunpack.c.h.b16 %v159
    %v723 = vunpack.c.l.b16 %v160
    %v724 = vunpack.c.h.b16 %v160
    %v725 = vunpack.c.l.b16 %v161
    %v726 = vunpack.c.h.b16 %v161
    %v727 = vunpack.c.l.b16 %v162
    %v728 = vunpack.c.h.b16 %v162
    %v729 = vunpack.c.l.b16 %v163
    %v730 = vunpack.c.h.b16 %v163
    %v731 = vunpack.c.l.b16 %v164
    %v732 = vunpack.c.h.b16 %v164
    %v733 = vunpack.c.l.b16 %v165
    %v734 = vunpack.c.h.b16 %v165
    %v735 = vunpack.c.l.b16 %v166
    %v736 = vunpack.c.h.b16 %v166
    %v737 = vunpack.c.l.b16 %v167
    %v738 = vunpack.c.h.b16 %v167
    %v739 = vunpack.c.l.b16 %v168
    %v740 = vunpack.c.h.b16 %v168
    %v741 = vunpack.c.l.b16 %v169
    %v742 = vunpack.c.h.b16 %v169
    %v743 = vunpack.c.l.b16 %v170
    %v744 = vunpack.c.h.b16 %v170
    %v745 = vunpack.c.l.b16 %v171
    %v746 = vunpack.c.h.b16 %v171
    %v747 = vunpack.c.l.b16 %v172
    %v748 = vunpack.c.h.b16 %v172
    %v749 = vunpack.c.l.b16 %v173
    %v750 = vunpack.c.h.b16 %v173
    %v751 = vunpack.c.l.b16 %v174
    %v752 = vunpack.c.h.b16 %v174
    %v753 = vunpack.c.l.b16 %v175
    %v754 = vunpack.c.h.b16 %v175
    %v755 = vunpack.c.l.b16 %v176
    %v756 = vunpack.c.h.b16 %v176
    %v757 = vunpack.c.l.b16 %v177
    %v758 = vunpack.c.h.b16 %v177
    %v759 = vunpack.c.l.b16 %v178
    %v760 = vunpack.c.h.b16 %v178
    %v761 = vunpack.c.l.b16 %v179
    %v762 = vunpack.c.h.b16 %v179
    %v763 = vunpack.c.l.b16 %v180
    %v764 = vunpack.c.h.b16 %v180
    %v765 = vunpack.c.l.b16 %v181
    %v766 = vunpack.c.h.b16 %v181
    %v767 = vunpack.c.l.b16 %v182
    %v768 = vunpack.c.h.b16 %v182
    %v769 = vunpack.c.l.b16 %v183
    %v770 = vunpack.c.h.b16 %v183
    %v771 = vunpack.c.l.b16 %v184
    %v772 = vunpack.c.h.b16 %v184
    %v773 = vunpack.c.l.b16 %v185
    %v774 = vunpack.c.h.b16 %v185
    %v775 = vunpack.c.l.b16 %v186
    %v776 = vunpack.c.h.b16 %v186
    %v777 = vunpack.c.l.b16 %v187
    %v778 = vunpack.c.h.b16 %v187
    %v779 = vunpack.c.l.b16 %v188
    %v780 = vunpack.c.h.b16 %v188
    %v781 = vunpack.c.l.b16 %v189
    %v782 = vunpack.c.h.b16 %v189
    %v783 = vunpack.c.l.b16 %v190
    %v784 = vunpack.c.h.b16 %v190
    %v785 = vunpack.c.l.b16 %v191
    %v786 = vunpack.c.h.b16 %v191
    %v787 = vunpack.c.l.b16 %v192
    %v788 = vunpack.c.h.b16 %v192
    %v789 = vunpack.c.l.b16 %v193
    %v790 = vunpack.c.h.b16 %v193
    %v791 = vunpack.c.l.b16 %v194
    %v792 = vunpack.c.h.b16 %v194
    %v793 = vunpack.c.l.b16 %v195
    %v794 = vunpack.c.h.b16 %v195
    %v795 = vunpack.c.l.b16 %v196
    %v796 = vunpack.c.h.b16 %v196
    %v797 = vunpack.c.l.b16 %v197
    %v798 = vunpack.c.h.b16 %v197
    %v799 = vunpack.c.l.b16 %v198
    %v800 = vunpack.c.h.b16 %v198
    %v801 = vunpack.c.l.b16 %v199
    %v802 = vunpack.c.h.b16 %v199
    %v803 = vunpack.c.l.b16 %v200
    %v804 = vunpack.c.h.b16 %v200
    %v805 = vunpack.c.l.b16 %v201
    %v806 = vunpack.c.h.b16 %v201
    %v807 = vunpack.c.l.b16 %v202
    %v808 = vunpack.c.h.b16 %v202
    %v809 = vunpack.c.l.b16 %v203
    %v810 = vunpack.c.h.b16 %v203
    %v811 = vunpack.c.l.b16 %v204
    %v812 = vunpack.c.h.b16 %v204
    %v813 = vunpack.c.l.b16 %v205
    %v814 = vunpack.c.h.b16 %v205
    %v815 = vunpack.c.l.b16 %v206
    %v816 = vunpack.c.h.b16 %v206
    %v817 = vunpack.c.l.b16 %v207
    %v818 = vunpack.c.h.b16 %v207
    %v819 = vunpack.c.l.b16 %v208
    %v820 = vunpack.c.h.b16 %v208
    %v821 = vunpack.c.l.b16 %v209
    %v822 = vunpack.c.h.b16 %v209
    %v823 = vunpack.c.l.b16 %v210
    %v824 = vunpack.c.h.b16 %v210
    %v825 = vunpack.c.l.b16 %v211
    %v826 = vunpack.c.h.b16 %v211
    %v827 = vunpack.c.l.b16 %v212
    %v828 = vunpack.c.h.b16 %v212
    %v829 = vunpack.c.l.b16 %v213
    %v830 = vunpack.c.h.b16 %v213
    %v831 = vunpack.c.l.b16 %v214
    %v832 = vunpack.c.h.b16 %v214
    %v833 = vunpack.c.l.b16 %v215
    %v834 = vunpack.c.h.b16 %v215
    %v835 = vunpack.c.l.b16 %v216
    %v836 = vunpack.c.h.b16 %v216
    %v837 = vunpack.c.l.b16 %v217
    %v838 = vunpack.c.h.b16 %v217
    %v839 = vunpack.c.l.b16 %v218
    %v840 = vunpack.c.h.b16 %v218
    %v841 = vunpack.c.l.b16 %v219
    %v842 = vunpack.c.h.b16 %v219
    %v843 = vunpack.c.l.b16 %v220
    %v844 = vunpack.c.h.b16 %v220
    %v845 = vunpack.c.l.b16 %v221
    %v846 = vunpack.c.h.b16 %v221
    %v847 = vunpack.c.l.b16 %v222
    %v848 = vunpack.c.h.b16 %v222
    %v849 = vunpack.c.l.b16 %v223
    %v850 = vunpack.c.h.b16 %v223
    %v851 = vunpack.c.l.b16 %v224
    %v852 = vunpack.c.h.b16 %v224
    %v853 = vunpack.c.l.b16 %v225
    %v854 = vunpack.c.h.b16 %v225
    %v855 = vunpack.c.l.b16 %v226
    %v856 = vunpack.c.h.b16 %v226
    %v857 = vunpack.c.l.b16 %v227
    %v858 = vunpack.c.h.b16 %v227
    %v859 = vunpack.c.l.b16 %v228
    %v860 = vunpack.c.h.b16 %v228
    %v861 = vunpack.c.l.b16 %v229
    %v862 = vunpack.c.h.b16 %v229
    %v863 = vunpack.c.l.b16 %v230
    %v864 = vunpack.c.h.b16 %v230
    %v865 = vunpack.c.l.b16 %v231
    %v866 = vunpack.c.h.b16 %v231
    %v867 = vunpack.c.l.b16 %v232
    %v868 = vunpack.c.h.b16 %v232
    %v869 = vunpack.c.l.b16 %v233
    %v870 = vunpack.c.h.b16 %v233
    %v871 = vunpack.c.l.b16 %v234
    %v872 = vunpack.c.h.b16 %v234
    %v873 = vunpack.c.l.b16 %v235
    %v874 = vunpack.c.h.b16 %v235
    %v875 = vunpack.c.l.b16 %v236
    %v876 = vunpack.c.h.b16 %v236
    %v877 = vunpack.c.l.b16 %v237
    %v878 = vunpack.c.h.b16 %v237
    %v879 = vunpack.c.l.b16 %v238
    %v880 = vunpack.c.h.b16 %v238
    %v881 = vunpack.c.l.b16 %v239
    %v882 = vunpack.c.h.b16 %v239
    %v883 = vunpack.c.l.b16 %v240
    %v884 = vunpack.c.h.b16 %v240
    %v885 = vunpack.c.l.b16 %v241
    %v886 = vunpack.c.h.b16 %v241
    %v887 = vunpack.c.l.b16 %v242
    %v888 = vunpack.c.h.b16 %v242
    %v889 = vunpack.c.l.b16 %v243
    %v890 = vunpack.c.h.b16 %v243
    %v891 = vunpack.c.l.b16 %v244
    %v892 = vunpack.c.h.b16 %v244
    %v893 = vunpack.c.l.b16 %v245
    %v894 = vunpack.c.h.b16 %v245
    %v895 = vunpack.c.l.b16 %v246
    %v896 = vunpack.c.h.b16 %v246
    %v897 = vunpack.c.l.b16 %v247
    %v898 = vunpack.c.h.b16 %v247
    %v899 = vunpack.c.l.b16 %v248
    %v900 = vunpack.c.h.b16 %v248
    %v901 = vunpack.c.l.b16 %v249
    %v902 = vunpack.c.h.b16 %v249
    %v903 = vunpack.c.l.b16 %v250
    %v904 = vunpack.c.h.b16 %v250
    %v905 = vunpack.c.l.b16 %v251
    %v906 = vunpack.c.h.b16 %v251
    %v907 = vunpack.c.l.b16 %v252
    %v908 = vunpack.c.h.b16 %v252
    %v909 = vunpack.c.l.b16 %v253
    %v910 = vunpack.c.h.b16 %v253
    %v911 = vunpack.c.l.b16 %v254
    %v912 = vunpack.c.h.b16 %v254
    %v913 = vunpack.c.l.b16 %v255
    %v914 = vunpack.c.h.b16 %v255
    %v915 = vunpack.c.l.b16 %v256
    %v916 = vunpack.c.h.b16 %v256
    %v917 = vunpack.c.l.b16 %v257
    %v918 = vunpack.c.h.b16 %v257
    %v919 = vunpack.c.l.b16 %v258
    %v920 = vunpack.c.h.b16 %v258
    %v921 = vunpack.c.l.b16 %v259
    %v922 = vunpack.c.h.b16 %v259
    %v923 = vunpack.c.l.b16 %v260
    %v924 = vunpack.c.h.b16 %v260
    %v925 = vunpack.c.l.b16 %v261
    %v926 = vunpack.c.h.b16 %v261
    %v927 = vunpack.c.l.b16 %v262
    %v928 = vunpack.c.h.b16 %v262
    %v929 = vunpack.c.l.b16 %v263
    %v930 = vunpack.c.h.b16 %v263
    %v931 = vunpack.c.l.b16 %v264
    %v932 = vunpack.c.h.b16 %v264
    %v933 = vunpack.c.l.b16 %v265
    %v934 = vunpack.c.h.b16 %v265
    %v935 = vunpack.c.l.b16 %v266
    %v936 = vunpack.c.h.b16 %v266
    %v937 = vunpack.c.l.b16 %v267
    %v938 = vunpack.c.h.b16 %v267
    %v939 = vunpack.c.l.b16 %v268
    %v940 = vunpack.c.h.b16 %v268
    %v941 = vunpack.c.l.b16 %v269
    %v942 = vunpack.c.h.b16 %v269
    %v943 = vunpack.c.l.b16 %v270
    %v944 = vunpack.c.h.b16 %v270
    %v945 = vunpack.c.l.b16 %v271
    %v946 = vunpack.c.h.b16 %v271
    %v947 = vunpack.c.l.b16 %v272
    %v948 = vunpack.c.h.b16 %v272
    %v949 = vunpack.c.l.b16 %v273
    %v950 = vunpack.c.h.b16 %v273
    %v951 = vunpack.c.l.b16 %v274
    %v952 = vunpack.c.h.b16 %v274
    %v953 = vunpack.c.l.b16 %v275
    %v954 = vunpack.c.h.b16 %v275
    %v955 = vunpack.c.l.b16 %v276
    %v956 = vunpack.c.h.b16 %v276
    %v957 = vunpack.c.l.b16 %v277
    %v958 = vunpack.c.h.b16 %v277
    %v959 = vunpack.c.l.b16 %v278
    %v960 = vunpack.c.h.b16 %v278
    %v961 = vunpack.c.l.b16 %v279
    %v962 = vunpack.c.h.b16 %v279
    %v963 = vunpack.c.l.b16 %v280
    %v964 = vunpack.c.h.b16 %v280
    %v965 = vunpack.c.l.b16 %v281
    %v966 = vunpack.c.h.b16 %v281
    %v967 = vunpack.c.l.b16 %v282
    %v968 = vunpack.c.h.b16 %v282
    %v969 = vunpack.c.l.b16 %v283
    %v970 = vunpack.c.h.b16 %v283
    %v971 = vunpack.c.l.b16 %v284
    %v972 = vunpack.c.h.b16 %v284
    %v973 = vunpack.c.l.b16 %v285
    %v974 = vunpack.c.h.b16 %v285
    %v975 = vunpack.c.l.b16 %v286
    %v976 = vunpack.c.h.b16 %v286
    %v977 = vunpack.c.l.b16 %v287
    %v978 = vunpack.c.h.b16 %v287
    %v979 = vunpack.c.l.b16 %v288
    %v980 = vunpack.c.h.b16 %v288
    %v981 = vunpack.c.l.b16 %v289
    %v982 = vunpack.c.h.b16 %v289
    %v983 = vunpack.c.l.b16 %v290
    %v984 = vunpack.c.h.b16 %v290
    %v985 = vunpack.c.l.b16 %v291
    %v986 = vunpack.c.h.b16 %v291
    %v987 = vunpack.c.l.b16 %v292
    %v988 = vunpack.c.h.b16 %v292
    %v989 = vunpack.c.l.b16 %v293
    %v990 = vunpack.c.h.b16 %v293
    %v991 = vunpack.c.l.b16 %v294
    %v992 = vunpack.c.h.b16 %v294
    %v993 = vunpack.c.l.b16 %v295
    %v994 = vunpack.c.h.b16 %v295
    %v995 = vunpack.c.l.b16 %v296
    %v996 = vunpack.c.h.b16 %v296
    %v997 = vunpack.c.l.b16 %v297
    %v998 = vunpack.c.h.b16 %v297
    %v999 = vunpack.c.l.b16 %v298
    %v1000 = vunpack.c.h.b16 %v298
    %v1001 = vunpack.c.l.b16 %v299
    %v1002 = vunpack.c.h.b16 %v299
    %v1003 = vunpack.c.l.b16 %v300
    %v1004 = vunpack.c.h.b16 %v300
    %v1005 = vunpack.c.l.b16 %v301
    %v1006 = vunpack.c.h.b16 %v301
    %v1007 = vunpack.c.l.b16 %v302
    %v1008 = vunpack.c.h.b16 %v302
    %v1009 = vunpack.c.l.b16 %v303
    %v1010 = vunpack.c.h.b16 %v303
    %v1011 = vunpack.c.l.b16 %v304
    %v1012 = vunpack.c.h.b16 %v304
    %v1013 = vunpack.c.l.b16 %v305
    %v1014 = vunpack.c.h.b16 %v305
    %v1015 = vunpack.c.l.b16 %v306
    %v1016 = vunpack.c.h.b16 %v306
    %v1017 = vunpack.c.l.b16 %v307
    %v1018 = vunpack.c.h.b16 %v307
    %v1019 = vunpack.c.l.b16 %v308
    %v1020 = vunpack.c.h.b16 %v308
    %v1021 = vunpack.c.l.b16 %v309
    %v1022 = vunpack.c.h.b16 %v309
    %v1023 = vunpack.c.l.b16 %v310
    %v1024 = vunpack.c.h.b16 %v310
    %v1025 = vunpack.c.l.b16 %v311
    %v1026 = vunpack.c.h.b16 %v311
    %v1027 = vunpack.c.l.b16 %v312
    %v1028 = vunpack.c.h.b16 %v312
    %v1029 = vunpack.c.l.b16 %v313
    %v1030 = vunpack.c.h.b16 %v313
    %v1031 = vunpack.c.l.b16 %v314
    %v1032 = vunpack.c.h.b16 %v314
    %v1033 = vunpack.c.l.b16 %v315
    %v1034 = vunpack.c.h.b16 %v315
    %v1035 = vunpack.c.l.b16 %v316
    %v1036 = vunpack.c.h.b16 %v316
    %v1037 = vunpack.c.l.b16 %v317
    %v1038 = vunpack.c.h.b16 %v317
    %v1039 = vunpack.c.l.b16 %v318
    %v1040 = vunpack.c.h.b16 %v318
    %v1041 = vunpack.c.l.b16 %v319
    %v1042 = vunpack.c.h.b16 %v319
    %v1043 = vunpack.c.l.b16 %v320
    %v1044 = vunpack.c.h.b16 %v320
    %v1045 = vunpack.c.l.b16 %v321
    %v1046 = vunpack.c.h.b16 %v321
    %v1047 = vunpack.c.l.b16 %v322
    %v1048 = vunpack.c.h.b16 %v322
    %v1049 = vunpack.c.l.b16 %v323
    %v1050 = vunpack.c.h.b16 %v323
    %v1051 = vunpack.c.l.b16 %v324
    %v1052 = vunpack.c.h.b16 %v324
    %v1053 = vunpack.c.l.b16 %v325
    %v1054 = vunpack.c.h.b16 %v325
    %v1055 = vunpack.c.l.b16 %v326
    %v1056 = vunpack.c.h.b16 %v326
    %v1057 = vunpack.c.l.b16 %v327
    %v1058 = vunpack.c.h.b16 %v327
    %v1059 = vunpack.c.l.b16 %v328
    %v1060 = vunpack.c.h.b16 %v328
    %v1061 = vunpack.c.l.b16 %v329
    %v1062 = vunpack.c.h.b16 %v329
    %v1063 = vunpack.c.l.b16 %v330
    %v1064 = vunpack.c.h.b16 %v330
    %v1065 = vunpack.c.l.b16 %v331
    %v1066 = vunpack.c.h.b16 %v331
    %v1067 = vunpack.c.l.b16 %v332
    %v1068 = vunpack.c.h.b16 %v332
    %v1069 = vunpack.c.l.b16 %v333
    %v1070 = vunpack.c.h.b16 %v333
    %v1071 = vunpack.c.l.b16 %v334
    %v1072 = vunpack.c.h.b16 %v334
    %v1073 = vunpack.c.l.b16 %v335
    %v1074 = vunpack.c.h.b16 %v335
    %v1075 = vunpack.c.l.b16 %v336
    %v1076 = vunpack.c.h.b16 %v336
    %v1077 = vunpack.c.l.b16 %v337
    %v1078 = vunpack.c.h.b16 %v337
    %v1079 = vpack.c.b16 %v699, %v695
    %v1080 = vpack.c.b16 %v700, %v696
    %v1081 = vpack.c.b16 %v701, %v697
    %v1082 = vpack.c.b16 %v702, %v698
    %v1083 = vpack.c.b16 %v707, %v703
    %v1084 = vpack.c.b16 %v708, %v704
    %v1085 = vpack.c.b16 %v709, %v705
    %v1086 = vpack.c.b16 %v710, %v706
    %v1087 = vpack.c.b16 %v715, %v711
    %v1088 = vpack.c.b16 %v716, %v712
    %v1089 = vpack.c.b16 %v717, %v713
    %v1090 = vpack.c.b16 %v718, %v714
    %v1091 = vpack.c.b16 %v723, %v719
    %v1092 = vpack.c.b16 %v724, %v720
    %v1093 = vpack.c.b16 %v725, %v721
    %v1094 = vpack.c.b16 %v726, %v722
    %v1095 = vpack.c.b16 %v731, %v727
    %v1096 = vpack.c.b16 %v732, %v728
    %v1097 = vpack.c.b16 %v733, %v729
    %v1098 = vpack.c.b16 %v734, %v730
    %v1099 = vpack.c.b16 %v739, %v735
    %v1100 = vpack.c.b16 %v740, %v736
    %v1101 = vpack.c.b16 %v741, %v737
    %v1102 = vpack.c.b16 %v742, %v738
    %v1103 = vpack.c.b16 %v747, %v743
    %v1104 = vpack.c.b16 %v748, %v744
    %v1105 = vpack.c.b16 %v749, %v745
    %v1106 = vpack.c.b16 %v750, %v746
    %v1107 = vpack.c.b16 %v755, %v751
    %v1108 = vpack.c.b16 %v756, %v752
    %v1109 = vpack.c.b16 %v757, %v753
    %v1110 = vpack.c.b16 %v758, %v754
    %v1111 = vpack.c.b16 %v763, %v759
    %v1112 = vpack.c.b16 %v764, %v760
    %v1113 = vpack.c.b16 %v765, %v761
    %v1114 = vpack.c.b16 %v766, %v762
    %v1115 = vpack.c.b16 %v771, %v767
    %v1116 = vpack.c.b16 %v772, %v768
    %v1117 = vpack.c.b16 %v773, %v769
    %v1118 = vpack.c.b16 %v774, %v770
    %v1119 = vpack.c.b16 %v779, %v775
    %v1120 = vpack.c.b16 %v780, %v776
    %v1121 = vpack.c.b16 %v781, %v777
    %v1122 = vpack.c.b16 %v782, %v778
    %v1123 = vpack.c.b16 %v787, %v783
    %v1124 = vpack.c.b16 %v788, %v784
    %v1125 = vpack.c.b16 %v789, %v785
    %v1126 = vpack.c.b16 %v790, %v786
    %v1127 = vpack.c.b16 %v795, %v791
    %v1128 = vpack.c.b16 %v796, %v792
    %v1129 = vpack.c.b16 %v797, %v793
    %v1130 = vpack.c.b16 %v798, %v794
    %v1131 = vpack.c.b16 %v803, %v799
    %v1132 = vpack.c.b16 %v804, %v800
    %v1133 = vpack.c.b16 %v805, %v801
    %v1134 = vpack.c.b16 %v806, %v802
    %v1135 = vpack.c.b16 %v811, %v807
    %v1136 = vpack.c.b16 %v812, %v808
    %v1137 = vpack.c.b16 %v813, %v809
    %v1138 = vpack.c.b16 %v814, %v810
    %v1139 = vpack.c.b16 %v819, %v815
    %v1140 = vpack.c.b16 %v820, %v816
    %v1141 = vpack.c.b16 %v821, %v817
    %v1142 = vpack.c.b16 %v822, %v818
    %v1143 = vpack.c.b16 %v827, %v823
    %v1144 = vpack.c.b16 %v828, %v824
    %v1145 = vpack.c.b16 %v829, %v825
    %v1146 = vpack.c.b16 %v830, %v826
    %v1147 = vpack.c.b16 %v835, %v831
    %v1148 = vpack.c.b16 %v836, %v832
    %v1149 = vpack.c.b16 %v837, %v833
    %v1150 = vpack.c.b16 %v838, %v834
    %v1151 = vpack.c.b16 %v843, %v839
    %v1152 = vpack.c.b16 %v844, %v840
    %v1153 = vpack.c.b16 %v845, %v841
    %v1154 = vpack.c.b16 %v846, %v842
    %v1155 = vpack.c.b16 %v851, %v847
    %v1156 = vpack.c.b16 %v852, %v848
    %v1157 = vpack.c.b16 %v853, %v849
    %v1158 = vpack.c.b16 %v854, %v850
    %v1159 = vpack.c.b16 %v859, %v855
    %v1160 = vpack.c.b16 %v860, %v856
    %v1161 = vpack.c.b16 %v861, %v857
    %v1162 = vpack.c.b16 %v862, %v858
    %v1163 = vpack.c.b16 %v867, %v863
    %v1164 = vpack.c.b16 %v868, %v864
    %v1165 = vpack.c.b16 %v869, %v865
    %v1166 = vpack.c.b16 %v870, %v866
    %v1167 = vpack.c.b16 %v875, %v871
    %v1168 = vpack.c.b16 %v876, %v872
    %v1169 = vpack.c.b16 %v877, %v873
    %v1170 = vpack.c.b16 %v878, %v874
    %v1171 = vpack.c.b16 %v883, %v879
    %v1172 = vpack.c.b16 %v884, %v880
    %v1173 = vpack.c.b16 %v885, %v881
    %v1174 = vpack.c.b16 %v886, %v882
    %v1175 = vpack.c.b16 %v891, %v887
    %v1176 = vpack.c.b16 %v892, %v888
    %v1177 = vpack.c.b16 %v893, %v889
    %v1178 = vpack.c.b16 %v894, %v890
    %v1179 = vpack.c.b16 %v899, %v895
    %v1180 = vpack.c.b16 %v900, %v896
    %v1181 = vpack.c.b16 %v901, %v897
    %v1182 = vpack.c.b16 %v902, %v898
    %v1183 = vpack.c.b16 %v907, %v903
    %v1184 = vpack.c.b16 %v908, %v904
    %v1185 = vpack.c.b16 %v909, %v905
    %v1186 = vpack.c.b16 %v910, %v906
    %v1187 = vpack.c.b16 %v915, %v911
    %v1188 = vpack.c.b16 %v916, %v912
    %v1189 = vpack.c.b16 %v917, %v913
    %v1190 = vpack.c.b16 %v918, %v914
    %v1191 = vpack.c.b16 %v923, %v919
    %v1192 = vpack.c.b16 %v924, %v920
    %v1193 = vpack.c.b16 %v925, %v921
    %v1194 = vpack.c.b16 %v926, %v922
    %v1195 = vpack.c.b16 %v931, %v927
    %v1196 = vpack.c.b16 %v932, %v928
    %v1197 = vpack.c.b16 %v933, %v929
    %v1198 = vpack.c.b16 %v934, %v930
    %v1199 = vpack.c.b16 %v939, %v935
    %v1200 = vpack.c.b16 %v940, %v936
    %v1201 = vpack.c.b16 %v941, %v937
    %v1202 = vpack.c.b16 %v942, %v938
    %v1203 = vpack.c.b16 %v947, %v943
    %v1204 = vpack.c.b16 %v948, %v944
    %v1205 = vpack.c.b16 %v949, %v945
    %v1206 = vpack.c.b16 %v950, %v946
    %v1207 = vpack.c.b16 %v955, %v951
    %v1208 = vpack.c.b16 %v956, %v952
    %v1209 = vpack.c.b16 %v957, %v953
    %v1210 = vpack.c.b16 %v958, %v954
    %v1211 = vpack.c.b16 %v963, %v959
    %v1212 = vpack.c.b16 %v964, %v960
    %v1213 = vpack.c.b16 %v965, %v961
    %v1214 = vpack.c.b16 %v966, %v962
    %v1215 = vpack.c.b16 %v971, %v967
    %v1216 = vpack.c.b16 %v972, %v968
    %v1217 = vpack.c.b16 %v973, %v969
    %v1218 = vpack.c.b16 %v974, %v970
    %v1219 = vpack.c.b16 %v979, %v975
    %v1220 = vpack.c.b16 %v980, %v976
    %v1221 = vpack.c.b16 %v981, %v977
    %v1222 = vpack.c.b16 %v982, %v978
    %v1223 = vpack.c.b16 %v987, %v983
    %v1224 = vpack.c.b16 %v988, %v984
    %v1225 = vpack.c.b16 %v989, %v985
    %v1226 = vpack.c.b16 %v990, %v986
    %v1227 = vpack.c.b16 %v995, %v991
    %v1228 = vpack.c.b16 %v996, %v992
    %v1229 = vpack.c.b16 %v997, %v993
    %v1230 = vpack.c.b16 %v998, %v994
    %v1231 = vpack.c.b16 %v1003, %v999
    %v1232 = vpack.c.b16 %v1004, %v1000
    %v1233 = vpack.c.b16 %v1005, %v1001
    %v1234 = vpack.c.b16 %v1006, %v1002
    %v1235 = vpack.c.b16 %v1011, %v1007
    %v1236 = vpack.c.b16 %v1012, %v1008
    %v1237 = vpack.c.b16 %v1013, %v1009
    %v1238 = vpack.c.b16 %v1014, %v1010
    %v1239 = vpack.c.b16 %v1019, %v1015
    %v1240 = vpack.c.b16 %v1020, %v1016
    %v1241 = vpack.c.b16 %v1021, %v1017
    %v1242 = vpack.c.b16 %v1022, %v1018
    %v1243 = vpack.c.b16 %v1027, %v1023
    %v1244 = vpack.c.b16 %v1028, %v1024
    %v1245 = vpack.c.b16 %v1029, %v1025
    %v1246 = vpack.c.b16 %v1030, %v1026
    %v1247 = vpack.c.b16 %v1035, %v1031
    %v1248 = vpack.c.b16 %v1036, %v1032
    %v1249 = vpack.c.b16 %v1037, %v1033
    %v1250 = vpack.c.b16 %v1038, %v1034
    %v1251 = vpack.c.b16 %v1043, %v1039
    %v1252 = vpack.c.b16 %v1044, %v1040
    %v1253 = vpack.c.b16 %v1045, %v1041
    %v1254 = vpack.c.b16 %v1046, %v1042
    %v1255 = vpack.c.b16 %v1051, %v1047
    %v1256 = vpack.c.b16 %v1052, %v1048
    %v1257 = vpack.c.b16 %v1053, %v1049
    %v1258 = vpack.c.b16 %v1054, %v1050
    %v1259 = vpack.c.b16 %v1059, %v1055
    %v1260 = vpack.c.b16 %v1060, %v1056
    %v1261 = vpack.c.b16 %v1061, %v1057
    %v1262 = vpack.c.b16 %v1062, %v1058
    %v1263 = vpack.c.b16 %v1067, %v1063
    %v1264 = vpack.c.b16 %v1068, %v1064
    %v1265 = vpack.c.b16 %v1069, %v1065
    %v1266 = vpack.c.b16 %v1070, %v1066
    %v1267 = vpack.c.b16 %v1075, %v1071
    %v1268 = vpack.c.b16 %v1076, %v1072
    %v1269 = vpack.c.b16 %v1077, %v1073
    %v1270 = vpack.c.b16 %v1078, %v1074
    %1463 = vmatprep.subr.bf16.mxu0 %v1080
    %1464 = vmatpush1.bf16.msra.mxu0 %v1079
    %1465 = vmatprep.subr.bf16.mxu0 %v1084
    %1466 = vmatpush1.bf16.msra.mxu0 %v1083
    %1467 = vmatprep.subr.bf16.mxu0 %v1088
    %1468 = vmatpush1.bf16.msra.mxu0 %v1087
    %1469 = vmatprep.subr.bf16.mxu0 %v1092
    %1470 = vmatpush1.bf16.msra.mxu0 %v1091
    %1471 = vmatprep.subr.bf16.mxu0 %v1096
    %1472 = vmatpush1.bf16.msra.mxu0 %v1095
    %1473 = vmatprep.subr.bf16.mxu0 %v1100
    %1474 = vmatpush1.bf16.msra.mxu0 %v1099
    %1475 = vmatprep.subr.bf16.mxu0 %v1104
    %1476 = vmatpush1.bf16.msra.mxu0 %v1103
    %1477 = vmatprep.subr.bf16.mxu0 %v1108
    %1478 = vmatpush1.bf16.msra.mxu0 %v1107
    %1479 = vmatprep.subr.bf16.mxu0 %v1112
    %1480 = vmatpush1.bf16.msra.mxu0 %v1111
    %1481 = vmatprep.subr.bf16.mxu0 %v1116
    %1482 = vmatpush1.bf16.msra.mxu0 %v1115
    %1483 = vmatprep.subr.bf16.mxu0 %v1120
    %1484 = vmatpush1.bf16.msra.mxu0 %v1119
    %1485 = vmatprep.subr.bf16.mxu0 %v1124
    %1486 = vmatpush1.bf16.msra.mxu0 %v1123
    %1487 = vmatprep.subr.bf16.mxu0 %v1128
    %1488 = vmatpush1.bf16.msra.mxu0 %v1127
    %1489 = vmatprep.subr.bf16.mxu0 %v1132
    %1490 = vmatpush1.bf16.msra.mxu0 %v1131
    %1491 = vmatprep.subr.bf16.mxu0 %v1136
    %1492 = vmatpush1.bf16.msra.mxu0 %v1135
    %1493 = vmatprep.subr.bf16.mxu0 %v1140
    %1494 = vmatpush1.bf16.msra.mxu0 %v1139
    %1495 = vmatprep.mubr.bf16.mxu0 %v492
    %1496 = vmatmul.mubr.bf16.gmra.mrb[0].mxu0 %v491
    %v1497 = vpop.f32.mrb[0].mxu0
    %v1498 = vadd.f32 %v435, %v1497
    %v1499 = vpop.f32.mrb[0].mxu0
    %v1500 = vadd.f32 %v437, %v1499
    %v1501 = vpop.f32.mrb[0].mxu0
    %v1502 = vpop.f32.mrb[0].mxu0
    %1503 = vdwg.mxu0
    %1504 = vmatprep.subr.bf16.mxu0 %v1144
    %1505 = vmatpush1.bf16.msra.mxu0 %v1143
    %1506 = vmatprep.subr.bf16.mxu0 %v1148
    %1507 = vmatpush1.bf16.msra.mxu0 %v1147
    %1508 = vmatprep.subr.bf16.mxu0 %v1152
    %1509 = vmatpush1.bf16.msra.mxu0 %v1151
    %1510 = vmatprep.subr.bf16.mxu0 %v1156
    %1511 = vmatpush1.bf16.msra.mxu0 %v1155
    %1512 = vmatprep.subr.bf16.mxu0 %v1160
    %1513 = vmatpush1.bf16.msra.mxu0 %v1159
    %1514 = vmatprep.subr.bf16.mxu0 %v1164
    %1515 = vmatpush1.bf16.msra.mxu0 %v1163
    %1516 = vmatprep.subr.bf16.mxu0 %v1168
    %1517 = vmatpush1.bf16.msra.mxu0 %v1167
    %1518 = vmatprep.subr.bf16.mxu0 %v1172
    %1519 = vmatpush1.bf16.msra.mxu0 %v1171
    %1520 = vmatprep.subr.bf16.mxu0 %v1176
    %1521 = vmatpush1.bf16.msra.mxu0 %v1175
    %1522 = vmatprep.subr.bf16.mxu0 %v1180
    %1523 = vmatpush1.bf16.msra.mxu0 %v1179
    %1524 = vmatprep.subr.bf16.mxu0 %v1184
    %1525 = vmatpush1.bf16.msra.mxu0 %v1183
    %1526 = vmatprep.subr.bf16.mxu0 %v1188
    %1527 = vmatpush1.bf16.msra.mxu0 %v1187
    %1528 = vmatprep.subr.bf16.mxu0 %v1192
    %1529 = vmatpush1.bf16.msra.mxu0 %v1191
    %1530 = vmatprep.subr.bf16.mxu0 %v1196
    %1531 = vmatpush1.bf16.msra.mxu0 %v1195
    %1532 = vmatprep.subr.bf16.mxu0 %v1200
    %1533 = vmatpush1.bf16.msra.mxu0 %v1199
    %1534 = vmatprep.subr.bf16.mxu0 %v1204
    %1535 = vmatpush1.bf16.msra.mxu0 %v1203
    %1536 = vmatprep.mubr.bf16.mxu0 %v494
    %1537 = vmatmul.mubr.bf16.gmra.mrb[0].mxu0 %v493
    %v1538 = vpop.f32.mrb[0].mxu0
    %v1539 = vadd.f32 %v1498, %v1538
    %v1540 = vpop.f32.mrb[0].mxu0
    %v1541 = vadd.f32 %v1500, %v1540
    %v1542 = vpop.f32.mrb[0].mxu0
    %v1543 = vpop.f32.mrb[0].mxu0
    %1544 = vdwg.mxu0
    %1545 = vmatprep.subr.bf16.mxu0 %v1208
    %1546 = vmatpush1.bf16.msra.mxu0 %v1207
    %1547 = vmatprep.subr.bf16.mxu0 %v1212
    %1548 = vmatpush1.bf16.msra.mxu0 %v1211
    %1549 = vmatprep.subr.bf16.mxu0 %v1216
    %1550 = vmatpush1.bf16.msra.mxu0 %v1215
    %1551 = vmatprep.subr.bf16.mxu0 %v1220
    %1552 = vmatpush1.bf16.msra.mxu0 %v1219
    %1553 = vmatprep.subr.bf16.mxu0 %v1224
    %1554 = vmatpush1.bf16.msra.mxu0 %v1223
    %1555 = vmatprep.subr.bf16.mxu0 %v1228
    %1556 = vmatpush1.bf16.msra.mxu0 %v1227
    %1557 = vmatprep.subr.bf16.mxu0 %v1232
    %1558 = vmatpush1.bf16.msra.mxu0 %v1231
    %1559 = vmatprep.subr.bf16.mxu0 %v1236
    %1560 = vmatpush1.bf16.msra.mxu0 %v1235
    %1561 = vmatprep.subr.bf16.mxu0 %v1240
    %1562 = vmatpush1.bf16.msra.mxu0 %v1239
    %1563 = vmatprep.subr.bf16.mxu0 %v1244
    %1564 = vmatpush1.bf16.msra.mxu0 %v1243
    %1565 = vmatprep.subr.bf16.mxu0 %v1248
    %1566 = vmatpush1.bf16.msra.mxu0 %v1247
    %1567 = vmatprep.subr.bf16.mxu0 %v1252
    %1568 = vmatpush1.bf16.msra.mxu0 %v1251
    %1569 = vmatprep.subr.bf16.mxu0 %v1256
    %1570 = vmatpush1.bf16.msra.mxu0 %v1255
    %1571 = vmatprep.subr.bf16.mxu0 %v1260
    %1572 = vmatpush1.bf16.msra.mxu0 %v1259
    %1573 = vmatprep.subr.bf16.mxu0 %v1264
    %1574 = vmatpush1.bf16.msra.mxu0 %v1263
    %1575 = vmatprep.subr.bf16.mxu0 %v1268
    %1576 = vmatpush1.bf16.msra.mxu0 %v1267
    %1577 = vmatprep.mubr.bf16.mxu0 %v496
    %1578 = vmatmul.mubr.bf16.gmra.mrb[0].mxu0 %v495
    %v1579 = vpop.f32.mrb[0].mxu0
    %v1580 = vadd.f32 %v1539, %v1579
    %v1581 = vpop.f32.mrb[0].mxu0
    %v1582 = vadd.f32 %v1541, %v1581
    %v1583 = vpop.f32.mrb[0].mxu0
    %v1584 = vpop.f32.mrb[0].mxu0
    %1585 = vdwg.mxu0
    %1586 = vmatprep.subr.bf16.mxu0 %v1082
    %1587 = vmatpush1.bf16.msra.mxu0 %v1081
    %1588 = vmatprep.subr.bf16.mxu0 %v1086
    %1589 = vmatpush1.bf16.msra.mxu0 %v1085
    %1590 = vmatprep.subr.bf16.mxu0 %v1090
    %1591 = vmatpush1.bf16.msra.mxu0 %v1089
    %1592 = vmatprep.subr.bf16.mxu0 %v1094
    %1593 = vmatpush1.bf16.msra.mxu0 %v1093
    %1594 = vmatprep.subr.bf16.mxu0 %v1098
    %1595 = vmatpush1.bf16.msra.mxu0 %v1097
    %1596 = vmatprep.subr.bf16.mxu0 %v1102
    %1597 = vmatpush1.bf16.msra.mxu0 %v1101
    %1598 = vmatprep.subr.bf16.mxu0 %v1106
    %1599 = vmatpush1.bf16.msra.mxu0 %v1105
    %1600 = vmatprep.subr.bf16.mxu0 %v1110
    %1601 = vmatpush1.bf16.msra.mxu0 %v1109
    %1602 = vmatprep.subr.bf16.mxu0 %v1114
    %1603 = vmatpush1.bf16.msra.mxu0 %v1113
    %1604 = vmatprep.subr.bf16.mxu0 %v1118
    %1605 = vmatpush1.bf16.msra.mxu0 %v1117
    %1606 = vmatprep.subr.bf16.mxu0 %v1122
    %1607 = vmatpush1.bf16.msra.mxu0 %v1121
    %1608 = vmatprep.subr.bf16.mxu0 %v1126
    %1609 = vmatpush1.bf16.msra.mxu0 %v1125
    %1610 = vmatprep.subr.bf16.mxu0 %v1130
    %1611 = vmatpush1.bf16.msra.mxu0 %v1129
    %1612 = vmatprep.subr.bf16.mxu0 %v1134
    %1613 = vmatpush1.bf16.msra.mxu0 %v1133
    %1614 = vmatprep.subr.bf16.mxu0 %v1138
    %1615 = vmatpush1.bf16.msra.mxu0 %v1137
    %1616 = vmatprep.subr.bf16.mxu0 %v1142
    %1617 = vmatpush1.bf16.msra.mxu0 %v1141
    %1618 = vmatprep.mubr.bf16.mxu0 %v492
    %1619 = vmatmul.mubr.bf16.gmra.mrb[0].mxu0 %v491
    %v1620 = vpop.f32.mrb[0].mxu0
    %v1621 = vadd.f32 %v476, %v1620
    %v1622 = vpop.f32.mrb[0].mxu0
    %v1623 = vadd.f32 %v478, %v1622
    %v1624 = vpop.f32.mrb[0].mxu0
    %v1625 = vpop.f32.mrb[0].mxu0
    %1626 = vdwg.mxu0
    %1627 = vmatprep.subr.bf16.mxu0 %v1146
    %1628 = vmatpush1.bf16.msra.mxu0 %v1145
    %1629 = vmatprep.subr.bf16.mxu0 %v1150
    %1630 = vmatpush1.bf16.msra.mxu0 %v1149
    %1631 = vmatprep.subr.bf16.mxu0 %v1154
    %1632 = vmatpush1.bf16.msra.mxu0 %v1153
    %1633 = vmatprep.subr.bf16.mxu0 %v1158
    %1634 = vmatpush1.bf16.msra.mxu0 %v1157
    %1635 = vmatprep.subr.bf16.mxu0 %v1162
    %1636 = vmatpush1.bf16.msra.mxu0 %v1161
    %1637 = vmatprep.subr.bf16.mxu0 %v1166
    %1638 = vmatpush1.bf16.msra.mxu0 %v1165
    %1639 = vmatprep.subr.bf16.mxu0 %v1170
    %1640 = vmatpush1.bf16.msra.mxu0 %v1169
    %1641 = vmatprep.subr.bf16.mxu0 %v1174
    %1642 = vmatpush1.bf16.msra.mxu0 %v1173
    %1643 = vmatprep.subr.bf16.mxu0 %v1178
    %1644 = vmatpush1.bf16.msra.mxu0 %v1177
    %1645 = vmatprep.subr.bf16.mxu0 %v1182
    %1646 = vmatpush1.bf16.msra.mxu0 %v1181
    %1647 = vmatprep.subr.bf16.mxu0 %v1186
    %1648 = vmatpush1.bf16.msra.mxu0 %v1185
    %1649 = vmatprep.subr.bf16.mxu0 %v1190
    %1650 = vmatpush1.bf16.msra.mxu0 %v1189
    %1651 = vmatprep.subr.bf16.mxu0 %v1194
    %1652 = vmatpush1.bf16.msra.mxu0 %v1193
    %1653 = vmatprep.subr.bf16.mxu0 %v1198
    %1654 = vmatpush1.bf16.msra.mxu0 %v1197
    %1655 = vmatprep.subr.bf16.mxu0 %v1202
    %1656 = vmatpush1.bf16.msra.mxu0 %v1201
    %1657 = vmatprep.subr.bf16.mxu0 %v1206
    %1658 = vmatpush1.bf16.msra.mxu0 %v1205
    %1659 = vmatprep.mubr.bf16.mxu0 %v494
    %1660 = vmatmul.mubr.bf16.gmra.mrb[0].mxu0 %v493
    %v1661 = vpop.f32.mrb[0].mxu0
    %v1662 = vadd.f32 %v1621, %v1661
    %v1663 = vpop.f32.mrb[0].mxu0
    %v1664 = vadd.f32 %v1623, %v1663
    %v1665 = vpop.f32.mrb[0].mxu0
    %v1666 = vpop.f32.mrb[0].mxu0
    %1667 = vdwg.mxu0
    %1668 = vmatprep.subr.bf16.mxu0 %v1210
    %1669 = vmatpush1.bf16.msra.mxu0 %v1209
    %1670 = vmatprep.subr.bf16.mxu0 %v1214
    %1671 = vmatpush1.bf16.msra.mxu0 %v1213
    %1672 = vmatprep.subr.bf16.mxu0 %v1218
    %1673 = vmatpush1.bf16.msra.mxu0 %v1217
    %1674 = vmatprep.subr.bf16.mxu0 %v1222
    %1675 = vmatpush1.bf16.msra.mxu0 %v1221
    %1676 = vmatprep.subr.bf16.mxu0 %v1226
    %1677 = vmatpush1.bf16.msra.mxu0 %v1225
    %1678 = vmatprep.subr.bf16.mxu0 %v1230
    %1679 = vmatpush1.bf16.msra.mxu0 %v1229
    %1680 = vmatprep.subr.bf16.mxu0 %v1234
    %1681 = vmatpush1.bf16.msra.mxu0 %v1233
    %1682 = vmatprep.subr.bf16.mxu0 %v1238
    %1683 = vmatpush1.bf16.msra.mxu0 %v1237
    %1684 = vmatprep.subr.bf16.mxu0 %v1242
    %1685 = vmatpush1.bf16.msra.mxu0 %v1241
    %1686 = vmatprep.subr.bf16.mxu0 %v1246
    %1687 = vmatpush1.bf16.msra.mxu0 %v1245
    %1688 = vmatprep.subr.bf16.mxu0 %v1250
    %1689 = vmatpush1.bf16.msra.mxu0 %v1249
    %1690 = vmatprep.subr.bf16.mxu0 %v1254
    %1691 = vmatpush1.bf16.msra.mxu0 %v1253
    %1692 = vmatprep.subr.bf16.mxu0 %v1258
    %1693 = vmatpush1.bf16.msra.mxu0 %v1257
    %1694 = vmatprep.subr.bf16.mxu0 %v1262
    %1695 = vmatpush1.bf16.msra.mxu0 %v1261
    %1696 = vmatprep.subr.bf16.mxu0 %v1266
    %1697 = vmatpush1.bf16.msra.mxu0 %v1265
    %1698 = vmatprep.subr.bf16.mxu0 %v1270
    %1699 = vmatpush1.bf16.msra.mxu0 %v1269
    %1700 = vmatprep.mubr.bf16.mxu0 %v496
    %1701 = vmatmul.mubr.bf16.gmra.mrb[0].mxu0 %v495
    %v1702 = vpop.f32.mrb[0].mxu0
    %v1703 = vadd.f32 %v1662, %v1702
    %v1704 = vpop.f32.mrb[0].mxu0
    %v1705 = vadd.f32 %v1664, %v1704
    %v1706 = vpop.f32.mrb[0].mxu0
    %v1707 = vpop.f32.mrb[0].mxu0
    %1708 = vdwg.mxu0
    %v1709 = vld [vmem:[#allocation7] sm:$0xff]
    %v1710 = vld [vmem:[#allocation7 + $0x8] sm:$0xf]
    %v1711 = vld [vmem:[#allocation11] sm:$0xff]
    %v1712 = vld [vmem:[#allocation11 + $0x8] sm:$0xff]
    %v1713 = vld [vmem:[#allocation11 + $0x10] sm:$0xff]
    %v1714 = vld [vmem:[#allocation11 + $0x18] sm:$0xff]
    %v1715 = vld [vmem:[#allocation11 + $0x20] sm:$0xff]
    %v1716 = vld [vmem:[#allocation11 + $0x28] sm:$0xff]
    %v1717 = vld [vmem:[#allocation11 + $0x30] sm:$0xff]
    %v1718 = vld [vmem:[#allocation11 + $0x38] sm:$0xff]
    %v1719 = vld [vmem:[#allocation11 + $0x40] sm:$0xff]
    %v1720 = vld [vmem:[#allocation11 + $0x48] sm:$0xff]
    %v1721 = vld [vmem:[#allocation11 + $0x50] sm:$0xff]
    %v1722 = vld [vmem:[#allocation11 + $0x58] sm:$0xff]
    %v1723 = vld [vmem:[#allocation11 + $0x60] sm:$0xff]
    %v1724 = vld [vmem:[#allocation11 + $0x68] sm:$0xff]
    %v1725 = vld [vmem:[#allocation11 + $0x70] sm:$0xff]
    %v1726 = vld [vmem:[#allocation11 + $0x78] sm:$0xff]
    %v1727 = vld [vmem:[#allocation11 + $0x80] sm:$0xff]
    %v1728 = vld [vmem:[#allocation11 + $0x88] sm:$0xff]
    %v1729 = vld [vmem:[#allocation11 + $0x90] sm:$0xff]
    %v1730 = vld [vmem:[#allocation11 + $0x98] sm:$0xff]
    %v1731 = vld [vmem:[#allocation11 + $0xa0] sm:$0xff]
    %v1732 = vld [vmem:[#allocation11 + $0xa8] sm:$0xff]
    %v1733 = vld [vmem:[#allocation11 + $0xb0] sm:$0xff]
    %v1734 = vld [vmem:[#allocation11 + $0xb8] sm:$0xff]
    %v1735 = vld [vmem:[#allocation11 + $0xc0] sm:$0xff]
    %v1736 = vld [vmem:[#allocation11 + $0xc8] sm:$0xff]
    %v1737 = vld [vmem:[#allocation11 + $0xd0] sm:$0xff]
    %v1738 = vld [vmem:[#allocation11 + $0xd8] sm:$0xff]
    %v1739 = vld [vmem:[#allocation11 + $0xe0] sm:$0xff]
    %v1740 = vld [vmem:[#allocation11 + $0xe8] sm:$0xff]
    %v1741 = vld [vmem:[#allocation11 + $0xf0] sm:$0xff]
    %v1742 = vld [vmem:[#allocation11 + $0xf8] sm:$0xff]
    %v1743 = vld [vmem:[#allocation11 + $0x100] sm:$0xff]
    %v1744 = vld [vmem:[#allocation11 + $0x108] sm:$0xff]
    %v1745 = vld [vmem:[#allocation11 + $0x110] sm:$0xff]
    %v1746 = vld [vmem:[#allocation11 + $0x118] sm:$0xff]
    %v1747 = vld [vmem:[#allocation11 + $0x120] sm:$0xff]
    %v1748 = vld [vmem:[#allocation11 + $0x128] sm:$0xff]
    %v1749 = vld [vmem:[#allocation11 + $0x130] sm:$0xff]
    %v1750 = vld [vmem:[#allocation11 + $0x138] sm:$0xff]
    %v1751 = vld [vmem:[#allocation11 + $0x140] sm:$0xff]
    %v1752 = vld [vmem:[#allocation11 + $0x148] sm:$0xff]
    %v1753 = vld [vmem:[#allocation11 + $0x150] sm:$0xff]
    %v1754 = vld [vmem:[#allocation11 + $0x158] sm:$0xff]
    %v1755 = vld [vmem:[#allocation11 + $0x160] sm:$0xff]
    %v1756 = vld [vmem:[#allocation11 + $0x168] sm:$0xff]
    %v1757 = vld [vmem:[#allocation11 + $0x170] sm:$0xff]
    %v1758 = vld [vmem:[#allocation11 + $0x178] sm:$0xff]
    %v1759 = vld [vmem:[#allocation11 + $0x180] sm:$0xff]
    %v1760 = vld [vmem:[#allocation11 + $0x188] sm:$0xff]
    %v1761 = vld [vmem:[#allocation11 + $0x190] sm:$0xff]
    %v1762 = vld [vmem:[#allocation11 + $0x198] sm:$0xff]
    %v1763 = vld [vmem:[#allocation11 + $0x1a0] sm:$0xff]
    %v1764 = vld [vmem:[#allocation11 + $0x1a8] sm:$0xff]
    %v1765 = vld [vmem:[#allocation11 + $0x1b0] sm:$0xff]
    %v1766 = vld [vmem:[#allocation11 + $0x1b8] sm:$0xff]
    %v1767 = vld [vmem:[#allocation11 + $0x1c0] sm:$0xff]
    %v1768 = vld [vmem:[#allocation11 + $0x1c8] sm:$0xff]
    %v1769 = vld [vmem:[#allocation11 + $0x1d0] sm:$0xff]
    %v1770 = vld [vmem:[#allocation11 + $0x1d8] sm:$0xff]
    %v1771 = vld [vmem:[#allocation11 + $0x1e0] sm:$0xff]
    %v1772 = vld [vmem:[#allocation11 + $0x1e8] sm:$0xff]
    %v1773 = vld [vmem:[#allocation11 + $0x1f0] sm:$0xff]
    %v1774 = vld [vmem:[#allocation11 + $0x1f8] sm:$0xff]
    %v1775 = vld [vmem:[#allocation11 + $0x200] sm:$0xff]
    %v1776 = vld [vmem:[#allocation11 + $0x208] sm:$0xff]
    %v1777 = vld [vmem:[#allocation11 + $0x210] sm:$0xff]
    %v1778 = vld [vmem:[#allocation11 + $0x218] sm:$0xff]
    %v1779 = vld [vmem:[#allocation11 + $0x220] sm:$0xff]
    %v1780 = vld [vmem:[#allocation11 + $0x228] sm:$0xff]
    %v1781 = vld [vmem:[#allocation11 + $0x230] sm:$0xff]
    %v1782 = vld [vmem:[#allocation11 + $0x238] sm:$0xff]
    %v1783 = vld [vmem:[#allocation11 + $0x240] sm:$0xff]
    %v1784 = vld [vmem:[#allocation11 + $0x248] sm:$0xff]
    %v1785 = vld [vmem:[#allocation11 + $0x250] sm:$0xff]
    %v1786 = vld [vmem:[#allocation11 + $0x258] sm:$0xff]
    %v1787 = vld [vmem:[#allocation11 + $0x260] sm:$0xff]
    %v1788 = vld [vmem:[#allocation11 + $0x268] sm:$0xff]
    %v1789 = vld [vmem:[#allocation11 + $0x270] sm:$0xff]
    %v1790 = vld [vmem:[#allocation11 + $0x278] sm:$0xff]
    %v1791 = vld [vmem:[#allocation11 + $0x280] sm:$0xff]
    %v1792 = vld [vmem:[#allocation11 + $0x288] sm:$0xff]
    %v1793 = vld [vmem:[#allocation11 + $0x290] sm:$0xff]
    %v1794 = vld [vmem:[#allocation11 + $0x298] sm:$0xff]
    %v1795 = vld [vmem:[#allocation11 + $0x2a0] sm:$0xff]
    %v1796 = vld [vmem:[#allocation11 + $0x2a8] sm:$0xff]
    %v1797 = vld [vmem:[#allocation11 + $0x2b0] sm:$0xff]
    %v1798 = vld [vmem:[#allocation11 + $0x2b8] sm:$0xff]
    %v1799 = vld [vmem:[#allocation11 + $0x2c0] sm:$0xff]
    %v1800 = vld [vmem:[#allocation11 + $0x2c8] sm:$0xff]
    %v1801 = vld [vmem:[#allocation11 + $0x2d0] sm:$0xff]
    %v1802 = vld [vmem:[#allocation11 + $0x2d8] sm:$0xff]
    %v1803 = vld [vmem:[#allocation11 + $0x2e0] sm:$0xff]
    %v1804 = vld [vmem:[#allocation11 + $0x2e8] sm:$0xff]
    %v1805 = vld [vmem:[#allocation11 + $0x2f0] sm:$0xff]
    %v1806 = vld [vmem:[#allocation11 + $0x2f8] sm:$0xff]
    %v1809 = vunpack.c.l.b16 %v1709
    %v1810 = vunpack.c.h.b16 %v1709
    %v1811 = vunpack.c.l.b16 %v1710
    %v1812 = vpack.c.b16 %v1809, %v1809
    %v1813 = vpack.c.b16 %v1810, %v1810
    %v1814 = vpack.c.b16 %v1811, %v1811
    %v1914 = vunpack.c.l.b16 %v1711
    %v1915 = vunpack.c.h.b16 %v1711
    %v1916 = vunpack.c.l.b16 %v1712
    %v1917 = vunpack.c.h.b16 %v1712
    %v1918 = vunpack.c.l.b16 %v1713
    %v1919 = vunpack.c.h.b16 %v1713
    %v1920 = vunpack.c.l.b16 %v1714
    %v1921 = vunpack.c.h.b16 %v1714
    %v1922 = vunpack.c.l.b16 %v1715
    %v1923 = vunpack.c.h.b16 %v1715
    %v1924 = vunpack.c.l.b16 %v1716
    %v1925 = vunpack.c.h.b16 %v1716
    %v1926 = vunpack.c.l.b16 %v1717
    %v1927 = vunpack.c.h.b16 %v1717
    %v1928 = vunpack.c.l.b16 %v1718
    %v1929 = vunpack.c.h.b16 %v1718
    %v1930 = vunpack.c.l.b16 %v1719
    %v1931 = vunpack.c.h.b16 %v1719
    %v1932 = vunpack.c.l.b16 %v1720
    %v1933 = vunpack.c.h.b16 %v1720
    %v1934 = vunpack.c.l.b16 %v1721
    %v1935 = vunpack.c.h.b16 %v1721
    %v1936 = vunpack.c.l.b16 %v1722
    %v1937 = vunpack.c.h.b16 %v1722
    %v1938 = vunpack.c.l.b16 %v1723
    %v1939 = vunpack.c.h.b16 %v1723
    %v1940 = vunpack.c.l.b16 %v1724
    %v1941 = vunpack.c.h.b16 %v1724
    %v1942 = vunpack.c.l.b16 %v1725
    %v1943 = vunpack.c.h.b16 %v1725
    %v1944 = vunpack.c.l.b16 %v1726
    %v1945 = vunpack.c.h.b16 %v1726
    %v1946 = vunpack.c.l.b16 %v1727
    %v1947 = vunpack.c.h.b16 %v1727
    %v1948 = vunpack.c.l.b16 %v1728
    %v1949 = vunpack.c.h.b16 %v1728
    %v1950 = vunpack.c.l.b16 %v1729
    %v1951 = vunpack.c.h.b16 %v1729
    %v1952 = vunpack.c.l.b16 %v1730
    %v1953 = vunpack.c.h.b16 %v1730
    %v1954 = vunpack.c.l.b16 %v1731
    %v1955 = vunpack.c.h.b16 %v1731
    %v1956 = vunpack.c.l.b16 %v1732
    %v1957 = vunpack.c.h.b16 %v1732
    %v1958 = vunpack.c.l.b16 %v1733
    %v1959 = vunpack.c.h.b16 %v1733
    %v1960 = vunpack.c.l.b16 %v1734
    %v1961 = vunpack.c.h.b16 %v1734
    %v1962 = vunpack.c.l.b16 %v1735
    %v1963 = vunpack.c.h.b16 %v1735
    %v1964 = vunpack.c.l.b16 %v1736
    %v1965 = vunpack.c.h.b16 %v1736
    %v1966 = vunpack.c.l.b16 %v1737
    %v1967 = vunpack.c.h.b16 %v1737
    %v1968 = vunpack.c.l.b16 %v1738
    %v1969 = vunpack.c.h.b16 %v1738
    %v1970 = vunpack.c.l.b16 %v1739
    %v1971 = vunpack.c.h.b16 %v1739
    %v1972 = vunpack.c.l.b16 %v1740
    %v1973 = vunpack.c.h.b16 %v1740
    %v1974 = vunpack.c.l.b16 %v1741
    %v1975 = vunpack.c.h.b16 %v1741
    %v1976 = vunpack.c.l.b16 %v1742
    %v1977 = vunpack.c.h.b16 %v1742
    %v1978 = vunpack.c.l.b16 %v1743
    %v1979 = vunpack.c.h.b16 %v1743
    %v1980 = vunpack.c.l.b16 %v1744
    %v1981 = vunpack.c.h.b16 %v1744
    %v1982 = vunpack.c.l.b16 %v1745
    %v1983 = vunpack.c.h.b16 %v1745
    %v1984 = vunpack.c.l.b16 %v1746
    %v1985 = vunpack.c.h.b16 %v1746
    %v1986 = vunpack.c.l.b16 %v1747
    %v1987 = vunpack.c.h.b16 %v1747
    %v1988 = vunpack.c.l.b16 %v1748
    %v1989 = vunpack.c.h.b16 %v1748
    %v1990 = vunpack.c.l.b16 %v1749
    %v1991 = vunpack.c.h.b16 %v1749
    %v1992 = vunpack.c.l.b16 %v1750
    %v1993 = vunpack.c.h.b16 %v1750
    %v1994 = vunpack.c.l.b16 %v1751
    %v1995 = vunpack.c.h.b16 %v1751
    %v1996 = vunpack.c.l.b16 %v1752
    %v1997 = vunpack.c.h.b16 %v1752
    %v1998 = vunpack.c.l.b16 %v1753
    %v1999 = vunpack.c.h.b16 %v1753
    %v2000 = vunpack.c.l.b16 %v1754
    %v2001 = vunpack.c.h.b16 %v1754
    %v2002 = vunpack.c.l.b16 %v1755
    %v2003 = vunpack.c.h.b16 %v1755
    %v2004 = vunpack.c.l.b16 %v1756
    %v2005 = vunpack.c.h.b16 %v1756
    %v2006 = vunpack.c.l.b16 %v1757
    %v2007 = vunpack.c.h.b16 %v1757
    %v2008 = vunpack.c.l.b16 %v1758
    %v2009 = vunpack.c.h.b16 %v1758
    %v2010 = vunpack.c.l.b16 %v1759
    %v2011 = vunpack.c.h.b16 %v1759
    %v2012 = vunpack.c.l.b16 %v1760
    %v2013 = vunpack.c.h.b16 %v1760
    %v2014 = vunpack.c.l.b16 %v1761
    %v2015 = vunpack.c.h.b16 %v1761
    %v2016 = vunpack.c.l.b16 %v1762
    %v2017 = vunpack.c.h.b16 %v1762
    %v2018 = vunpack.c.l.b16 %v1763
    %v2019 = vunpack.c.h.b16 %v1763
    %v2020 = vunpack.c.l.b16 %v1764
    %v2021 = vunpack.c.h.b16 %v1764
    %v2022 = vunpack.c.l.b16 %v1765
    %v2023 = vunpack.c.h.b16 %v1765
    %v2024 = vunpack.c.l.b16 %v1766
    %v2025 = vunpack.c.h.b16 %v1766
    %v2026 = vunpack.c.l.b16 %v1767
    %v2027 = vunpack.c.h.b16 %v1767
    %v2028 = vunpack.c.l.b16 %v1768
    %v2029 = vunpack.c.h.b16 %v1768
    %v2030 = vunpack.c.l.b16 %v1769
    %v2031 = vunpack.c.h.b16 %v1769
    %v2032 = vunpack.c.l.b16 %v1770
    %v2033 = vunpack.c.h.b16 %v1770
    %v2034 = vunpack.c.l.b16 %v1771
    %v2035 = vunpack.c.h.b16 %v1771
    %v2036 = vunpack.c.l.b16 %v1772
    %v2037 = vunpack.c.h.b16 %v1772
    %v2038 = vunpack.c.l.b16 %v1773
    %v2039 = vunpack.c.h.b16 %v1773
    %v2040 = vunpack.c.l.b16 %v1774
    %v2041 = vunpack.c.h.b16 %v1774
    %v2042 = vunpack.c.l.b16 %v1775
    %v2043 = vunpack.c.h.b16 %v1775
    %v2044 = vunpack.c.l.b16 %v1776
    %v2045 = vunpack.c.h.b16 %v1776
    %v2046 = vunpack.c.l.b16 %v1777
    %v2047 = vunpack.c.h.b16 %v1777
    %v2048 = vunpack.c.l.b16 %v1778
    %v2049 = vunpack.c.h.b16 %v1778
    %v2050 = vunpack.c.l.b16 %v1779
    %v2051 = vunpack.c.h.b16 %v1779
    %v2052 = vunpack.c.l.b16 %v1780
    %v2053 = vunpack.c.h.b16 %v1780
    %v2054 = vunpack.c.l.b16 %v1781
    %v2055 = vunpack.c.h.b16 %v1781
    %v2056 = vunpack.c.l.b16 %v1782
    %v2057 = vunpack.c.h.b16 %v1782
    %v2058 = vunpack.c.l.b16 %v1783
    %v2059 = vunpack.c.h.b16 %v1783
    %v2060 = vunpack.c.l.b16 %v1784
    %v2061 = vunpack.c.h.b16 %v1784
    %v2062 = vunpack.c.l.b16 %v1785
    %v2063 = vunpack.c.h.b16 %v1785
    %v2064 = vunpack.c.l.b16 %v1786
    %v2065 = vunpack.c.h.b16 %v1786
    %v2066 = vunpack.c.l.b16 %v1787
    %v2067 = vunpack.c.h.b16 %v1787
    %v2068 = vunpack.c.l.b16 %v1788
    %v2069 = vunpack.c.h.b16 %v1788
    %v2070 = vunpack.c.l.b16 %v1789
    %v2071 = vunpack.c.h.b16 %v1789
    %v2072 = vunpack.c.l.b16 %v1790
    %v2073 = vunpack.c.h.b16 %v1790
    %v2074 = vunpack.c.l.b16 %v1791
    %v2075 = vunpack.c.h.b16 %v1791
    %v2076 = vunpack.c.l.b16 %v1792
    %v2077 = vunpack.c.h.b16 %v1792
    %v2078 = vunpack.c.l.b16 %v1793
    %v2079 = vunpack.c.h.b16 %v1793
    %v2080 = vunpack.c.l.b16 %v1794
    %v2081 = vunpack.c.h.b16 %v1794
    %v2082 = vunpack.c.l.b16 %v1795
    %v2083 = vunpack.c.h.b16 %v1795
    %v2084 = vunpack.c.l.b16 %v1796
    %v2085 = vunpack.c.h.b16 %v1796
    %v2086 = vunpack.c.l.b16 %v1797
    %v2087 = vunpack.c.h.b16 %v1797
    %v2088 = vunpack.c.l.b16 %v1798
    %v2089 = vunpack.c.h.b16 %v1798
    %v2090 = vunpack.c.l.b16 %v1799
    %v2091 = vunpack.c.h.b16 %v1799
    %v2092 = vunpack.c.l.b16 %v1800
    %v2093 = vunpack.c.h.b16 %v1800
    %v2094 = vunpack.c.l.b16 %v1801
    %v2095 = vunpack.c.h.b16 %v1801
    %v2096 = vunpack.c.l.b16 %v1802
    %v2097 = vunpack.c.h.b16 %v1802
    %v2098 = vunpack.c.l.b16 %v1803
    %v2099 = vunpack.c.h.b16 %v1803
    %v2100 = vunpack.c.l.b16 %v1804
    %v2101 = vunpack.c.h.b16 %v1804
    %v2102 = vunpack.c.l.b16 %v1805
    %v2103 = vunpack.c.h.b16 %v1805
    %v2104 = vunpack.c.l.b16 %v1806
    %v2105 = vunpack.c.h.b16 %v1806
    %v2106 = vpack.c.b16 %v1918, %v1914
    %v2107 = vpack.c.b16 %v1919, %v1915
    %v2108 = vpack.c.b16 %v1920, %v1916
    %v2109 = vpack.c.b16 %v1921, %v1917
    %v2110 = vpack.c.b16 %v1926, %v1922
    %v2111 = vpack.c.b16 %v1927, %v1923
    %v2112 = vpack.c.b16 %v1928, %v1924
    %v2113 = vpack.c.b16 %v1929, %v1925
    %v2114 = vpack.c.b16 %v1934, %v1930
    %v2115 = vpack.c.b16 %v1935, %v1931
    %v2116 = vpack.c.b16 %v1936, %v1932
    %v2117 = vpack.c.b16 %v1937, %v1933
    %v2118 = vpack.c.b16 %v1942, %v1938
    %v2119 = vpack.c.b16 %v1943, %v1939
    %v2120 = vpack.c.b16 %v1944, %v1940
    %v2121 = vpack.c.b16 %v1945, %v1941
    %v2122 = vpack.c.b16 %v1950, %v1946
    %v2123 = vpack.c.b16 %v1951, %v1947
    %v2124 = vpack.c.b16 %v1952, %v1948
    %v2125 = vpack.c.b16 %v1953, %v1949
    %v2126 = vpack.c.b16 %v1958, %v1954
    %v2127 = vpack.c.b16 %v1959, %v1955
    %v2128 = vpack.c.b16 %v1960, %v1956
    %v2129 = vpack.c.b16 %v1961, %v1957
    %v2130 = vpack.c.b16 %v1966, %v1962
    %v2131 = vpack.c.b16 %v1967, %v1963
    %v2132 = vpack.c.b16 %v1968, %v1964
    %v2133 = vpack.c.b16 %v1969, %v1965
    %v2134 = vpack.c.b16 %v1974, %v1970
    %v2135 = vpack.c.b16 %v1975, %v1971
    %v2136 = vpack.c.b16 %v1976, %v1972
    %v2137 = vpack.c.b16 %v1977, %v1973
    %v2138 = vpack.c.b16 %v1982, %v1978
    %v2139 = vpack.c.b16 %v1983, %v1979
    %v2140 = vpack.c.b16 %v1984, %v1980
    %v2141 = vpack.c.b16 %v1985, %v1981
    %v2142 = vpack.c.b16 %v1990, %v1986
    %v2143 = vpack.c.b16 %v1991, %v1987
    %v2144 = vpack.c.b16 %v1992, %v1988
    %v2145 = vpack.c.b16 %v1993, %v1989
    %v2146 = vpack.c.b16 %v1998, %v1994
    %v2147 = vpack.c.b16 %v1999, %v1995
    %v2148 = vpack.c.b16 %v2000, %v1996
    %v2149 = vpack.c.b16 %v2001, %v1997
    %v2150 = vpack.c.b16 %v2006, %v2002
    %v2151 = vpack.c.b16 %v2007, %v2003
    %v2152 = vpack.c.b16 %v2008, %v2004
    %v2153 = vpack.c.b16 %v2009, %v2005
    %v2154 = vpack.c.b16 %v2014, %v2010
    %v2155 = vpack.c.b16 %v2015, %v2011
    %v2156 = vpack.c.b16 %v2016, %v2012
    %v2157 = vpack.c.b16 %v2017, %v2013
    %v2158 = vpack.c.b16 %v2022, %v2018
    %v2159 = vpack.c.b16 %v2023, %v2019
    %v2160 = vpack.c.b16 %v2024, %v2020
    %v2161 = vpack.c.b16 %v2025, %v2021
    %v2162 = vpack.c.b16 %v2030, %v2026
    %v2163 = vpack.c.b16 %v2031, %v2027
    %v2164 = vpack.c.b16 %v2032, %v2028
    %v2165 = vpack.c.b16 %v2033, %v2029
    %v2166 = vpack.c.b16 %v2038, %v2034
    %v2167 = vpack.c.b16 %v2039, %v2035
    %v2168 = vpack.c.b16 %v2040, %v2036
    %v2169 = vpack.c.b16 %v2041, %v2037
    %v2170 = vpack.c.b16 %v2046, %v2042
    %v2171 = vpack.c.b16 %v2047, %v2043
    %v2172 = vpack.c.b16 %v2048, %v2044
    %v2173 = vpack.c.b16 %v2049, %v2045
    %v2174 = vpack.c.b16 %v2054, %v2050
    %v2175 = vpack.c.b16 %v2055, %v2051
    %v2176 = vpack.c.b16 %v2056, %v2052
    %v2177 = vpack.c.b16 %v2057, %v2053
    %v2178 = vpack.c.b16 %v2062, %v2058
    %v2179 = vpack.c.b16 %v2063, %v2059
    %v2180 = vpack.c.b16 %v2064, %v2060
    %v2181 = vpack.c.b16 %v2065, %v2061
    %v2182 = vpack.c.b16 %v2070, %v2066
    %v2183 = vpack.c.b16 %v2071, %v2067
    %v2184 = vpack.c.b16 %v2072, %v2068
    %v2185 = vpack.c.b16 %v2073, %v2069
    %v2186 = vpack.c.b16 %v2078, %v2074
    %v2187 = vpack.c.b16 %v2079, %v2075
    %v2188 = vpack.c.b16 %v2080, %v2076
    %v2189 = vpack.c.b16 %v2081, %v2077
    %v2190 = vpack.c.b16 %v2086, %v2082
    %v2191 = vpack.c.b16 %v2087, %v2083
    %v2192 = vpack.c.b16 %v2088, %v2084
    %v2193 = vpack.c.b16 %v2089, %v2085
    %v2194 = vpack.c.b16 %v2094, %v2090
    %v2195 = vpack.c.b16 %v2095, %v2091
    %v2196 = vpack.c.b16 %v2096, %v2092
    %v2197 = vpack.c.b16 %v2097, %v2093
    %v2198 = vpack.c.b16 %v2102, %v2098
    %v2199 = vpack.c.b16 %v2103, %v2099
    %v2200 = vpack.c.b16 %v2104, %v2100
    %v2201 = vpack.c.b16 %v2105, %v2101
    %2298 = vmatprep.subr.bf16.mxu0 %v2107
    %2299 = vmatpush1.bf16.msra.mxu0 %v2106
    %2300 = vmatprep.subr.bf16.mxu0 %v2111
    %2301 = vmatpush1.bf16.msra.mxu0 %v2110
    %2302 = vmatprep.subr.bf16.mxu0 %v2115
    %2303 = vmatpush1.bf16.msra.mxu0 %v2114
    %2304 = vmatprep.subr.bf16.mxu0 %v2119
    %2305 = vmatpush1.bf16.msra.mxu0 %v2118
    %2306 = vmatprep.subr.bf16.mxu0 %v2123
    %2307 = vmatpush1.bf16.msra.mxu0 %v2122
    %2308 = vmatprep.subr.bf16.mxu0 %v2127
    %2309 = vmatpush1.bf16.msra.mxu0 %v2126
    %2310 = vmatprep.subr.bf16.mxu0 %v2131
    %2311 = vmatpush1.bf16.msra.mxu0 %v2130
    %2312 = vmatprep.subr.bf16.mxu0 %v2135
    %2313 = vmatpush1.bf16.msra.mxu0 %v2134
    %2314 = vmatprep.subr.bf16.mxu0 %v2139
    %2315 = vmatpush1.bf16.msra.mxu0 %v2138
    %2316 = vmatprep.subr.bf16.mxu0 %v2143
    %2317 = vmatpush1.bf16.msra.mxu0 %v2142
    %2318 = vmatprep.subr.bf16.mxu0 %v2147
    %2319 = vmatpush1.bf16.msra.mxu0 %v2146
    %2320 = vmatprep.subr.bf16.mxu0 %v2151
    %2321 = vmatpush1.bf16.msra.mxu0 %v2150
    %2322 = vmatprep.subr.bf16.mxu0 %v2155
    %2323 = vmatpush1.bf16.msra.mxu0 %v2154
    %2324 = vmatprep.subr.bf16.mxu0 %v2159
    %2325 = vmatpush1.bf16.msra.mxu0 %v2158
    %2326 = vmatprep.subr.bf16.mxu0 %v2163
    %2327 = vmatpush1.bf16.msra.mxu0 %v2162
    %2328 = vmatprep.subr.bf16.mxu0 %v2167
    %2329 = vmatpush1.bf16.msra.mxu0 %v2166
    %2330 = vmatprep.mubr.bf16.mxu0 %v1813
    %2331 = vmatmul.mubr.bf16.gmra.mrb[0].mxu0 %v1812
    %v2332 = vpop.f32.mrb[0].mxu0
    %v2333 = vadd.f32 0.0, %v2332
    %v2334 = vpop.f32.mrb[0].mxu0
    %v2335 = vadd.f32 0.0, %v2334
    %v2336 = vpop.f32.mrb[0].mxu0
    %v2337 = vpop.f32.mrb[0].mxu0
    %2338 = vdwg.mxu0
    %2339 = vmatprep.subr.bf16.mxu0 %v2171
    %2340 = vmatpush1.bf16.msra.mxu0 %v2170
    %2341 = vmatprep.subr.bf16.mxu0 %v2175
    %2342 = vmatpush1.bf16.msra.mxu0 %v2174
    %2343 = vmatprep.subr.bf16.mxu0 %v2179
    %2344 = vmatpush1.bf16.msra.mxu0 %v2178
    %2345 = vmatprep.subr.bf16.mxu0 %v2183
    %2346 = vmatpush1.bf16.msra.mxu0 %v2182
    %2347 = vmatprep.subr.bf16.mxu0 %v2187
    %2348 = vmatpush1.bf16.msra.mxu0 %v2186
    %2349 = vmatprep.subr.bf16.mxu0 %v2191
    %2350 = vmatpush1.bf16.msra.mxu0 %v2190
    %2351 = vmatprep.subr.bf16.mxu0 %v2195
    %2352 = vmatpush1.bf16.msra.mxu0 %v2194
    %2353 = vmatprep.subr.bf16.mxu0 %v2199
    %2354 = vmatpush1.bf16.msra.mxu0 %v2198
    %2355 = vmatprep.subr.bf16.mxu0 0
    %2356 = vmatpush1.bf16.msra.mxu0 0
    %2357 = vmatprep.subr.bf16.mxu0 0
    %2358 = vmatpush1.bf16.msra.mxu0 0
    %2359 = vmatprep.subr.bf16.mxu0 0
    %2360 = vmatpush1.bf16.msra.mxu0 0
    %2361 = vmatprep.subr.bf16.mxu0 0
    %2362 = vmatpush1.bf16.msra.mxu0 0
    %2363 = vmatprep.subr.bf16.mxu0 0
    %2364 = vmatpush1.bf16.msra.mxu0 0
    %2365 = vmatprep.subr.bf16.mxu0 0
    %2366 = vmatpush1.bf16.msra.mxu0 0
    %2367 = vmatprep.subr.bf16.mxu0 0
    %2368 = vmatpush1.bf16.msra.mxu0 0
    %2369 = vmatprep.subr.bf16.mxu0 0
    %2370 = vmatpush1.bf16.msra.mxu0 0
    %2371 = vmatprep.mubr.bf16.mxu0 0
    %2372 = vmatmul.mubr.bf16.gmra.mrb[0].mxu0 %v1814
    %v2373 = vpop.f32.mrb[0].mxu0
    %v2374 = vadd.f32 %v2333, %v2373
    %v2375 = vpop.f32.mrb[0].mxu0
    %v2376 = vadd.f32 %v2335, %v2375
    %v2377 = vpop.f32.mrb[0].mxu0
    %v2378 = vpop.f32.mrb[0].mxu0
    %2379 = vdwg.mxu0
    %2380 = vmatprep.subr.bf16.mxu0 %v2109
    %2381 = vmatpush1.bf16.msra.mxu0 %v2108
    %2382 = vmatprep.subr.bf16.mxu0 %v2113
    %2383 = vmatpush1.bf16.msra.mxu0 %v2112
    %2384 = vmatprep.subr.bf16.mxu0 %v2117
    %2385 = vmatpush1.bf16.msra.mxu0 %v2116
    %2386 = vmatprep.subr.bf16.mxu0 %v2121
    %2387 = vmatpush1.bf16.msra.mxu0 %v2120
    %2388 = vmatprep.subr.bf16.mxu0 %v2125
    %2389 = vmatpush1.bf16.msra.mxu0 %v2124
    %2390 = vmatprep.subr.bf16.mxu0 %v2129
    %2391 = vmatpush1.bf16.msra.mxu0 %v2128
    %2392 = vmatprep.subr.bf16.mxu0 %v2133
    %2393 = vmatpush1.bf16.msra.mxu0 %v2132
    %2394 = vmatprep.subr.bf16.mxu0 %v2137
    %2395 = vmatpush1.bf16.msra.mxu0 %v2136
    %2396 = vmatprep.subr.bf16.mxu0 %v2141
    %2397 = vmatpush1.bf16.msra.mxu0 %v2140
    %2398 = vmatprep.subr.bf16.mxu0 %v2145
    %2399 = vmatpush1.bf16.msra.mxu0 %v2144
    %2400 = vmatprep.subr.bf16.mxu0 %v2149
    %2401 = vmatpush1.bf16.msra.mxu0 %v2148
    %2402 = vmatprep.subr.bf16.mxu0 %v2153
    %2403 = vmatpush1.bf16.msra.mxu0 %v2152
    %2404 = vmatprep.subr.bf16.mxu0 %v2157
    %2405 = vmatpush1.bf16.msra.mxu0 %v2156
    %2406 = vmatprep.subr.bf16.mxu0 %v2161
    %2407 = vmatpush1.bf16.msra.mxu0 %v2160
    %2408 = vmatprep.subr.bf16.mxu0 %v2165
    %2409 = vmatpush1.bf16.msra.mxu0 %v2164
    %2410 = vmatprep.subr.bf16.mxu0 %v2169
    %2411 = vmatpush1.bf16.msra.mxu0 %v2168
    %2412 = vmatprep.mubr.bf16.mxu0 %v1813
    %2413 = vmatmul.mubr.bf16.gmra.mrb[0].mxu0 %v1812
    %v2414 = vpop.f32.mrb[0].mxu0
    %v2415 = vadd.f32 0.0, %v2414
    %v2416 = vpop.f32.mrb[0].mxu0
    %v2417 = vadd.f32 0.0, %v2416
    %v2418 = vpop.f32.mrb[0].mxu0
    %v2419 = vpop.f32.mrb[0].mxu0
    %2420 = vdwg.mxu0
    %2421 = vmatprep.subr.bf16.mxu0 %v2173
    %2422 = vmatpush1.bf16.msra.mxu0 %v2172
    %2423 = vmatprep.subr.bf16.mxu0 %v2177
    %2424 = vmatpush1.bf16.msra.mxu0 %v2176
    %2425 = vmatprep.subr.bf16.mxu0 %v2181
    %2426 = vmatpush1.bf16.msra.mxu0 %v2180
    %2427 = vmatprep.subr.bf16.mxu0 %v2185
    %2428 = vmatpush1.bf16.msra.mxu0 %v2184
    %2429 = vmatprep.subr.bf16.mxu0 %v2189
    %2430 = vmatpush1.bf16.msra.mxu0 %v2188
    %2431 = vmatprep.subr.bf16.mxu0 %v2193
    %2432 = vmatpush1.bf16.msra.mxu0 %v2192
    %2433 = vmatprep.subr.bf16.mxu0 %v2197
    %2434 = vmatpush1.bf16.msra.mxu0 %v2196
    %2435 = vmatprep.subr.bf16.mxu0 %v2201
    %2436 = vmatpush1.bf16.msra.mxu0 %v2200
    %2437 = vmatprep.subr.bf16.mxu0 0
    %2438 = vmatpush1.bf16.msra.mxu0 0
    %2439 = vmatprep.subr.bf16.mxu0 0
    %2440 = vmatpush1.bf16.msra.mxu0 0
    %2441 = vmatprep.subr.bf16.mxu0 0
    %2442 = vmatpush1.bf16.msra.mxu0 0
    %2443 = vmatprep.subr.bf16.mxu0 0
    %2444 = vmatpush1.bf16.msra.mxu0 0
    %2445 = vmatprep.subr.bf16.mxu0 0
    %2446 = vmatpush1.bf16.msra.mxu0 0
    %2447 = vmatprep.subr.bf16.mxu0 0
    %2448 = vmatpush1.bf16.msra.mxu0 0
    %2449 = vmatprep.subr.bf16.mxu0 0
    %2450 = vmatpush1.bf16.msra.mxu0 0
    %2451 = vmatprep.subr.bf16.mxu0 0
    %2452 = vmatpush1.bf16.msra.mxu0 0
    %2453 = vmatprep.mubr.bf16.mxu0 0
    %2454 = vmatmul.mubr.bf16.gmra.mrb[0].mxu0 %v1814
    %v2455 = vpop.f32.mrb[0].mxu0
    %v2456 = vadd.f32 %v2415, %v2455
    %v2457 = vpop.f32.mrb[0].mxu0
    %v2458 = vadd.f32 %v2417, %v2457
    %v2459 = vpop.f32.mrb[0].mxu0
    %v2460 = vpop.f32.mrb[0].mxu0
    %2461 = vdwg.mxu0
    %v2462 = vadd.f32 %v1580, %v2374
    %v2463 = vadd.f32 %v1582, %v2376
    %v2464 = vadd.f32 %v1703, %v2456
    %v2465 = vadd.f32 %v1705, %v2458
    %v2466 = vld [vmem:[%s6] sm:$0xf]
    %v2468 = vlaneseq
    %v2469 = vshrl.u32 %v2468, 7
    %v2470 = vsub.s32 0, %v2469
    %v2471 = vrot.slane %v2466, %v2470
    %v2472 = vlaneseq
    %v2473 = vshrl.u32 %v2472, 7
    %v2474 = vsub.s32 1, %v2473
    %v2475 = vrot.slane %v2466, %v2474
    %v2476 = vlaneseq
    %v2477 = vshrl.u32 %v2476, 7
    %v2478 = vsub.s32 2, %v2477
    %v2479 = vrot.slane %v2466, %v2478
    %v2480 = vlaneseq
    %v2481 = vshrl.u32 %v2480, 7
    %v2482 = vsub.s32 3, %v2481
    %v2483 = vrot.slane %v2466, %v2482
    %v2488 = vadd.f32 %v2462, %v2471
    %v2489 = vadd.f32 %v2463, %v2475
    %v2490 = vadd.f32 %v2464, %v2479
    %v2491 = vadd.f32 %v2465, %v2483
    %v2492 = vmul.f32 %v2488, 0.2
    %v2493 = vmul.f32 %v2489, 0.2
    %v2494 = vmul.f32 %v2490, 0.2
    %v2495 = vmul.f32 %v2491, 0.2
    %v2496 = vmax.f32 %v2488, %v2492
    %v2497 = vmax.f32 %v2489, %v2493
    %v2498 = vmax.f32 %v2490, %v2494
    %v2499 = vmax.f32 %v2491, %v2495
    %v2500 = vpack.c.bf16 %v2496, %v2496
    %v2501 = vpack.c.bf16 %v2497, %v2497
    %v2502 = vpack.c.bf16 %v2498, %v2498
    %v2503 = vpack.c.bf16 %v2499, %v2499
    %v2504 = vld [vmem:[#allocation13] sm:$0xff]
    %v2505 = vld [vmem:[#allocation13 + $0x8] sm:$0xff]
    %v2506 = vld [vmem:[#allocation13 + $0x10] sm:$0xff]
    %v2507 = vld [vmem:[#allocation13 + $0x18] sm:$0xff]
    %v2508 = vld [vmem:[#allocation13 + $0x20] sm:$0xff]
    %v2509 = vld [vmem:[#allocation13 + $0x28] sm:$0xff]
    %v2510 = vld [vmem:[#allocation13 + $0x30] sm:$0xff]
    %v2511 = vld [vmem:[#allocation13 + $0x38] sm:$0xff]
    %v2512 = vld [vmem:[#allocation13 + $0x40] sm:$0xff]
    %v2513 = vld [vmem:[#allocation13 + $0x48] sm:$0xff]
    %v2514 = vld [vmem:[#allocation13 + $0x50] sm:$0xff]
    %v2515 = vld [vmem:[#allocation13 + $0x58] sm:$0xff]
    %v2516 = vld [vmem:[#allocation13 + $0x60] sm:$0xff]
    %v2517 = vld [vmem:[#allocation13 + $0x68] sm:$0xff]
    %v2518 = vld [vmem:[#allocation13 + $0x70] sm:$0xff]
    %v2519 = vld [vmem:[#allocation13 + $0x78] sm:$0xff]
    %v2520 = vld [vmem:[#allocation13 + $0x80] sm:$0xff]
    %v2521 = vld [vmem:[#allocation13 + $0x88] sm:$0xff]
    %v2522 = vld [vmem:[#allocation13 + $0x90] sm:$0xff]
    %v2523 = vld [vmem:[#allocation13 + $0x98] sm:$0xff]
    %v2524 = vld [vmem:[#allocation13 + $0xa0] sm:$0xff]
    %v2525 = vld [vmem:[#allocation13 + $0xa8] sm:$0xff]
    %v2526 = vld [vmem:[#allocation13 + $0xb0] sm:$0xff]
    %v2527 = vld [vmem:[#allocation13 + $0xb8] sm:$0xff]
    %v2528 = vld [vmem:[#allocation13 + $0xc0] sm:$0xff]
    %v2529 = vld [vmem:[#allocation13 + $0xc8] sm:$0xff]
    %v2530 = vld [vmem:[#allocation13 + $0xd0] sm:$0xff]
    %v2531 = vld [vmem:[#allocation13 + $0xd8] sm:$0xff]
    %v2532 = vld [vmem:[#allocation13 + $0xe0] sm:$0xff]
    %v2533 = vld [vmem:[#allocation13 + $0xe8] sm:$0xff]
    %v2534 = vld [vmem:[#allocation13 + $0xf0] sm:$0xff]
    %v2535 = vld [vmem:[#allocation13 + $0xf8] sm:$0xff]
    %v2536 = vld [vmem:[#allocation13 + $0x100] sm:$0xff]
    %v2537 = vld [vmem:[#allocation13 + $0x108] sm:$0xff]
    %v2538 = vld [vmem:[#allocation13 + $0x110] sm:$0xff]
    %v2539 = vld [vmem:[#allocation13 + $0x118] sm:$0xff]
    %v2540 = vld [vmem:[#allocation13 + $0x120] sm:$0xff]
    %v2541 = vld [vmem:[#allocation13 + $0x128] sm:$0xff]
    %v2542 = vld [vmem:[#allocation13 + $0x130] sm:$0xff]
    %v2543 = vld [vmem:[#allocation13 + $0x138] sm:$0xff]
    %v2544 = vld [vmem:[#allocation13 + $0x140] sm:$0xff]
    %v2545 = vld [vmem:[#allocation13 + $0x148] sm:$0xff]
    %v2546 = vld [vmem:[#allocation13 + $0x150] sm:$0xff]
    %v2547 = vld [vmem:[#allocation13 + $0x158] sm:$0xff]
    %v2548 = vld [vmem:[#allocation13 + $0x160] sm:$0xff]
    %v2549 = vld [vmem:[#allocation13 + $0x168] sm:$0xff]
    %v2550 = vld [vmem:[#allocation13 + $0x170] sm:$0xff]
    %v2551 = vld [vmem:[#allocation13 + $0x178] sm:$0xff]
    %v2552 = vld [vmem:[#allocation13 + $0x180] sm:$0xff]
    %v2553 = vld [vmem:[#allocation13 + $0x188] sm:$0xff]
    %v2554 = vld [vmem:[#allocation13 + $0x190] sm:$0xff]
    %v2555 = vld [vmem:[#allocation13 + $0x198] sm:$0xff]
    %v2556 = vld [vmem:[#allocation13 + $0x1a0] sm:$0xff]
    %v2557 = vld [vmem:[#allocation13 + $0x1a8] sm:$0xff]
    %v2558 = vld [vmem:[#allocation13 + $0x1b0] sm:$0xff]
    %v2559 = vld [vmem:[#allocation13 + $0x1b8] sm:$0xff]
    %v2560 = vld [vmem:[#allocation13 + $0x1c0] sm:$0xff]
    %v2561 = vld [vmem:[#allocation13 + $0x1c8] sm:$0xff]
    %v2562 = vld [vmem:[#allocation13 + $0x1d0] sm:$0xff]
    %v2563 = vld [vmem:[#allocation13 + $0x1d8] sm:$0xff]
    %v2564 = vld [vmem:[#allocation13 + $0x1e0] sm:$0xff]
    %v2565 = vld [vmem:[#allocation13 + $0x1e8] sm:$0xff]
    %v2566 = vld [vmem:[#allocation13 + $0x1f0] sm:$0xff]
    %v2567 = vld [vmem:[#allocation13 + $0x1f8] sm:$0xff]
    %v2568 = vld [vmem:[%s8] sm:$0x3]
    %v2570 = vlaneseq
    %v2571 = vshrl.u32 %v2570, 7
    %v2572 = vsub.s32 0, %v2571
    %v2573 = vrot.slane %v2568, %v2572
    %v2574 = vlaneseq
    %v2575 = vshrl.u32 %v2574, 7
    %v2576 = vsub.s32 1, %v2575
    %v2577 = vrot.slane %v2568, %v2576
    %v2644 = vunpack.c.l.b16 %v2504
    %v2645 = vunpack.c.h.b16 %v2504
    %v2646 = vunpack.c.l.b16 %v2505
    %v2647 = vunpack.c.h.b16 %v2505
    %v2648 = vunpack.c.l.b16 %v2506
    %v2649 = vunpack.c.h.b16 %v2506
    %v2650 = vunpack.c.l.b16 %v2507
    %v2651 = vunpack.c.h.b16 %v2507
    %v2652 = vunpack.c.l.b16 %v2508
    %v2653 = vunpack.c.h.b16 %v2508
    %v2654 = vunpack.c.l.b16 %v2509
    %v2655 = vunpack.c.h.b16 %v2509
    %v2656 = vunpack.c.l.b16 %v2510
    %v2657 = vunpack.c.h.b16 %v2510
    %v2658 = vunpack.c.l.b16 %v2511
    %v2659 = vunpack.c.h.b16 %v2511
    %v2660 = vunpack.c.l.b16 %v2512
    %v2661 = vunpack.c.h.b16 %v2512
    %v2662 = vunpack.c.l.b16 %v2513
    %v2663 = vunpack.c.h.b16 %v2513
    %v2664 = vunpack.c.l.b16 %v2514
    %v2665 = vunpack.c.h.b16 %v2514
    %v2666 = vunpack.c.l.b16 %v2515
    %v2667 = vunpack.c.h.b16 %v2515
    %v2668 = vunpack.c.l.b16 %v2516
    %v2669 = vunpack.c.h.b16 %v2516
    %v2670 = vunpack.c.l.b16 %v2517
    %v2671 = vunpack.c.h.b16 %v2517
    %v2672 = vunpack.c.l.b16 %v2518
    %v2673 = vunpack.c.h.b16 %v2518
    %v2674 = vunpack.c.l.b16 %v2519
    %v2675 = vunpack.c.h.b16 %v2519
    %v2676 = vunpack.c.l.b16 %v2520
    %v2677 = vunpack.c.h.b16 %v2520
    %v2678 = vunpack.c.l.b16 %v2521
    %v2679 = vunpack.c.h.b16 %v2521
    %v2680 = vunpack.c.l.b16 %v2522
    %v2681 = vunpack.c.h.b16 %v2522
    %v2682 = vunpack.c.l.b16 %v2523
    %v2683 = vunpack.c.h.b16 %v2523
    %v2684 = vunpack.c.l.b16 %v2524
    %v2685 = vunpack.c.h.b16 %v2524
    %v2686 = vunpack.c.l.b16 %v2525
    %v2687 = vunpack.c.h.b16 %v2525
    %v2688 = vunpack.c.l.b16 %v2526
    %v2689 = vunpack.c.h.b16 %v2526
    %v2690 = vunpack.c.l.b16 %v2527
    %v2691 = vunpack.c.h.b16 %v2527
    %v2692 = vunpack.c.l.b16 %v2528
    %v2693 = vunpack.c.h.b16 %v2528
    %v2694 = vunpack.c.l.b16 %v2529
    %v2695 = vunpack.c.h.b16 %v2529
    %v2696 = vunpack.c.l.b16 %v2530
    %v2697 = vunpack.c.h.b16 %v2530
    %v2698 = vunpack.c.l.b16 %v2531
    %v2699 = vunpack.c.h.b16 %v2531
    %v2700 = vunpack.c.l.b16 %v2532
    %v2701 = vunpack.c.h.b16 %v2532
    %v2702 = vunpack.c.l.b16 %v2533
    %v2703 = vunpack.c.h.b16 %v2533
    %v2704 = vunpack.c.l.b16 %v2534
    %v2705 = vunpack.c.h.b16 %v2534
    %v2706 = vunpack.c.l.b16 %v2535
    %v2707 = vunpack.c.h.b16 %v2535
    %v2708 = vunpack.c.l.b16 %v2536
    %v2709 = vunpack.c.h.b16 %v2536
    %v2710 = vunpack.c.l.b16 %v2537
    %v2711 = vunpack.c.h.b16 %v2537
    %v2712 = vunpack.c.l.b16 %v2538
    %v2713 = vunpack.c.h.b16 %v2538
    %v2714 = vunpack.c.l.b16 %v2539
    %v2715 = vunpack.c.h.b16 %v2539
    %v2716 = vunpack.c.l.b16 %v2540
    %v2717 = vunpack.c.h.b16 %v2540
    %v2718 = vunpack.c.l.b16 %v2541
    %v2719 = vunpack.c.h.b16 %v2541
    %v2720 = vunpack.c.l.b16 %v2542
    %v2721 = vunpack.c.h.b16 %v2542
    %v2722 = vunpack.c.l.b16 %v2543
    %v2723 = vunpack.c.h.b16 %v2543
    %v2724 = vunpack.c.l.b16 %v2544
    %v2725 = vunpack.c.h.b16 %v2544
    %v2726 = vunpack.c.l.b16 %v2545
    %v2727 = vunpack.c.h.b16 %v2545
    %v2728 = vunpack.c.l.b16 %v2546
    %v2729 = vunpack.c.h.b16 %v2546
    %v2730 = vunpack.c.l.b16 %v2547
    %v2731 = vunpack.c.h.b16 %v2547
    %v2732 = vunpack.c.l.b16 %v2548
    %v2733 = vunpack.c.h.b16 %v2548
    %v2734 = vunpack.c.l.b16 %v2549
    %v2735 = vunpack.c.h.b16 %v2549
    %v2736 = vunpack.c.l.b16 %v2550
    %v2737 = vunpack.c.h.b16 %v2550
    %v2738 = vunpack.c.l.b16 %v2551
    %v2739 = vunpack.c.h.b16 %v2551
    %v2740 = vunpack.c.l.b16 %v2552
    %v2741 = vunpack.c.h.b16 %v2552
    %v2742 = vunpack.c.l.b16 %v2553
    %v2743 = vunpack.c.h.b16 %v2553
    %v2744 = vunpack.c.l.b16 %v2554
    %v2745 = vunpack.c.h.b16 %v2554
    %v2746 = vunpack.c.l.b16 %v2555
    %v2747 = vunpack.c.h.b16 %v2555
    %v2748 = vunpack.c.l.b16 %v2556
    %v2749 = vunpack.c.h.b16 %v2556
    %v2750 = vunpack.c.l.b16 %v2557
    %v2751 = vunpack.c.h.b16 %v2557
    %v2752 = vunpack.c.l.b16 %v2558
    %v2753 = vunpack.c.h.b16 %v2558
    %v2754 = vunpack.c.l.b16 %v2559
    %v2755 = vunpack.c.h.b16 %v2559
    %v2756 = vunpack.c.l.b16 %v2560
    %v2757 = vunpack.c.h.b16 %v2560
    %v2758 = vunpack.c.l.b16 %v2561
    %v2759 = vunpack.c.h.b16 %v2561
    %v2760 = vunpack.c.l.b16 %v2562
    %v2761 = vunpack.c.h.b16 %v2562
    %v2762 = vunpack.c.l.b16 %v2563
    %v2763 = vunpack.c.h.b16 %v2563
    %v2764 = vunpack.c.l.b16 %v2564
    %v2765 = vunpack.c.h.b16 %v2564
    %v2766 = vunpack.c.l.b16 %v2565
    %v2767 = vunpack.c.h.b16 %v2565
    %v2768 = vunpack.c.l.b16 %v2566
    %v2769 = vunpack.c.h.b16 %v2566
    %v2770 = vunpack.c.l.b16 %v2567
    %v2771 = vunpack.c.h.b16 %v2567
    %v2772 = vpack.c.b16 %v2646, %v2644
    %v2773 = vpack.c.b16 %v2647, %v2645
    %v2774 = vpack.c.b16 %v2650, %v2648
    %v2775 = vpack.c.b16 %v2651, %v2649
    %v2776 = vpack.c.b16 %v2654, %v2652
    %v2777 = vpack.c.b16 %v2655, %v2653
    %v2778 = vpack.c.b16 %v2658, %v2656
    %v2779 = vpack.c.b16 %v2659, %v2657
    %v2780 = vpack.c.b16 %v2662, %v2660
    %v2781 = vpack.c.b16 %v2663, %v2661
    %v2782 = vpack.c.b16 %v2666, %v2664
    %v2783 = vpack.c.b16 %v2667, %v2665
    %v2784 = vpack.c.b16 %v2670, %v2668
    %v2785 = vpack.c.b16 %v2671, %v2669
    %v2786 = vpack.c.b16 %v2674, %v2672
    %v2787 = vpack.c.b16 %v2675, %v2673
    %v2788 = vpack.c.b16 %v2678, %v2676
    %v2789 = vpack.c.b16 %v2679, %v2677
    %v2790 = vpack.c.b16 %v2682, %v2680
    %v2791 = vpack.c.b16 %v2683, %v2681
    %v2792 = vpack.c.b16 %v2686, %v2684
    %v2793 = vpack.c.b16 %v2687, %v2685
    %v2794 = vpack.c.b16 %v2690, %v2688
    %v2795 = vpack.c.b16 %v2691, %v2689
    %v2796 = vpack.c.b16 %v2694, %v2692
    %v2797 = vpack.c.b16 %v2695, %v2693
    %v2798 = vpack.c.b16 %v2698, %v2696
    %v2799 = vpack.c.b16 %v2699, %v2697
    %v2800 = vpack.c.b16 %v2702, %v2700
    %v2801 = vpack.c.b16 %v2703, %v2701
    %v2802 = vpack.c.b16 %v2706, %v2704
    %v2803 = vpack.c.b16 %v2707, %v2705
    %v2804 = vpack.c.b16 %v2710, %v2708
    %v2805 = vpack.c.b16 %v2711, %v2709
    %v2806 = vpack.c.b16 %v2714, %v2712
    %v2807 = vpack.c.b16 %v2715, %v2713
    %v2808 = vpack.c.b16 %v2718, %v2716
    %v2809 = vpack.c.b16 %v2719, %v2717
    %v2810 = vpack.c.b16 %v2722, %v2720
    %v2811 = vpack.c.b16 %v2723, %v2721
    %v2812 = vpack.c.b16 %v2726, %v2724
    %v2813 = vpack.c.b16 %v2727, %v2725
    %v2814 = vpack.c.b16 %v2730, %v2728
    %v2815 = vpack.c.b16 %v2731, %v2729
    %v2816 = vpack.c.b16 %v2734, %v2732
    %v2817 = vpack.c.b16 %v2735, %v2733
    %v2818 = vpack.c.b16 %v2738, %v2736
    %v2819 = vpack.c.b16 %v2739, %v2737
    %v2820 = vpack.c.b16 %v2742, %v2740
    %v2821 = vpack.c.b16 %v2743, %v2741
    %v2822 = vpack.c.b16 %v2746, %v2744
    %v2823 = vpack.c.b16 %v2747, %v2745
    %v2824 = vpack.c.b16 %v2750, %v2748
    %v2825 = vpack.c.b16 %v2751, %v2749
    %v2826 = vpack.c.b16 %v2754, %v2752
    %v2827 = vpack.c.b16 %v2755, %v2753
    %v2828 = vpack.c.b16 %v2758, %v2756
    %v2829 = vpack.c.b16 %v2759, %v2757
    %v2830 = vpack.c.b16 %v2762, %v2760
    %v2831 = vpack.c.b16 %v2763, %v2761
    %v2832 = vpack.c.b16 %v2766, %v2764
    %v2833 = vpack.c.b16 %v2767, %v2765
    %v2834 = vpack.c.b16 %v2770, %v2768
    %v2835 = vpack.c.b16 %v2771, %v2769
    %2900 = vmatprep.subr.bf16.mxu0 %v2773
    %2901 = vmatpush1.bf16.msra.mxu0 %v2772
    %2902 = vmatprep.subr.bf16.mxu0 %v2775
    %2903 = vmatpush1.bf16.msra.mxu0 %v2774
    %2904 = vmatprep.subr.bf16.mxu0 %v2777
    %2905 = vmatpush1.bf16.msra.mxu0 %v2776
    %2906 = vmatprep.subr.bf16.mxu0 %v2779
    %2907 = vmatpush1.bf16.msra.mxu0 %v2778
    %2908 = vmatprep.subr.bf16.mxu0 %v2781
    %2909 = vmatpush1.bf16.msra.mxu0 %v2780
    %2910 = vmatprep.subr.bf16.mxu0 %v2783
    %2911 = vmatpush1.bf16.msra.mxu0 %v2782
    %2912 = vmatprep.subr.bf16.mxu0 %v2785
    %2913 = vmatpush1.bf16.msra.mxu0 %v2784
    %2914 = vmatprep.subr.bf16.mxu0 %v2787
    %2915 = vmatpush1.bf16.msra.mxu0 %v2786
    %2916 = vmatprep.subr.bf16.mxu0 %v2789
    %2917 = vmatpush1.bf16.msra.mxu0 %v2788
    %2918 = vmatprep.subr.bf16.mxu0 %v2791
    %2919 = vmatpush1.bf16.msra.mxu0 %v2790
    %2920 = vmatprep.subr.bf16.mxu0 %v2793
    %2921 = vmatpush1.bf16.msra.mxu0 %v2792
    %2922 = vmatprep.subr.bf16.mxu0 %v2795
    %2923 = vmatpush1.bf16.msra.mxu0 %v2794
    %2924 = vmatprep.subr.bf16.mxu0 %v2797
    %2925 = vmatpush1.bf16.msra.mxu0 %v2796
    %2926 = vmatprep.subr.bf16.mxu0 %v2799
    %2927 = vmatpush1.bf16.msra.mxu0 %v2798
    %2928 = vmatprep.subr.bf16.mxu0 %v2801
    %2929 = vmatpush1.bf16.msra.mxu0 %v2800
    %2930 = vmatprep.subr.bf16.mxu0 %v2803
    %2931 = vmatpush1.bf16.msra.mxu0 %v2802
    %2932 = vmatprep.mubr.bf16.mxu0 %v2501
    %2933 = vmatmul.mubr.bf16.gmra.mrb[0].mxu0 %v2500
    %v2934 = vpop.f32.mrb[0].mxu0
    %v2935 = vadd.f32 %v2573, %v2934
    %v2936 = vpop.f32.mrb[0].mxu0
    %v2937 = vadd.f32 %v2577, %v2936
    %v2938 = vpop.f32.mrb[0].mxu0
    %v2939 = vpop.f32.mrb[0].mxu0
    %2940 = vdwg.mxu0
    %2941 = vmatprep.subr.bf16.mxu0 %v2805
    %2942 = vmatpush1.bf16.msra.mxu0 %v2804
    %2943 = vmatprep.subr.bf16.mxu0 %v2807
    %2944 = vmatpush1.bf16.msra.mxu0 %v2806
    %2945 = vmatprep.subr.bf16.mxu0 %v2809
    %2946 = vmatpush1.bf16.msra.mxu0 %v2808
    %2947 = vmatprep.subr.bf16.mxu0 %v2811
    %2948 = vmatpush1.bf16.msra.mxu0 %v2810
    %2949 = vmatprep.subr.bf16.mxu0 %v2813
    %2950 = vmatpush1.bf16.msra.mxu0 %v2812
    %2951 = vmatprep.subr.bf16.mxu0 %v2815
    %2952 = vmatpush1.bf16.msra.mxu0 %v2814
    %2953 = vmatprep.subr.bf16.mxu0 %v2817
    %2954 = vmatpush1.bf16.msra.mxu0 %v2816
    %2955 = vmatprep.subr.bf16.mxu0 %v2819
    %2956 = vmatpush1.bf16.msra.mxu0 %v2818
    %2957 = vmatprep.subr.bf16.mxu0 %v2821
    %2958 = vmatpush1.bf16.msra.mxu0 %v2820
    %2959 = vmatprep.subr.bf16.mxu0 %v2823
    %2960 = vmatpush1.bf16.msra.mxu0 %v2822
    %2961 = vmatprep.subr.bf16.mxu0 %v2825
    %2962 = vmatpush1.bf16.msra.mxu0 %v2824
    %2963 = vmatprep.subr.bf16.mxu0 %v2827
    %2964 = vmatpush1.bf16.msra.mxu0 %v2826
    %2965 = vmatprep.subr.bf16.mxu0 %v2829
    %2966 = vmatpush1.bf16.msra.mxu0 %v2828
    %2967 = vmatprep.subr.bf16.mxu0 %v2831
    %2968 = vmatpush1.bf16.msra.mxu0 %v2830
    %2969 = vmatprep.subr.bf16.mxu0 %v2833
    %2970 = vmatpush1.bf16.msra.mxu0 %v2832
    %2971 = vmatprep.subr.bf16.mxu0 %v2835
    %2972 = vmatpush1.bf16.msra.mxu0 %v2834
    %2973 = vmatprep.mubr.bf16.mxu0 %v2503
    %2974 = vmatmul.mubr.bf16.gmra.mrb[0].mxu0 %v2502
    %v2975 = vpop.f32.mrb[0].mxu0
    %v2976 = vadd.f32 %v2935, %v2975
    %v2977 = vpop.f32.mrb[0].mxu0
    %v2978 = vadd.f32 %v2937, %v2977
    %v2979 = vpop.f32.mrb[0].mxu0
    %v2980 = vpop.f32.mrb[0].mxu0
    %2981 = vdwg.mxu0
    %v2982 = vmul.f32 %v2976, 0.2
    %v2983 = vmul.f32 %v2978, 0.2
    %v2984 = vmax.f32 %v2976, %v2982
    %v2985 = vmax.f32 %v2978, %v2983
    %v2986 = vpack.c.bf16 %v2984, %v2984
    %v2987 = vpack.c.bf16 %v2985, %v2985
    %v2988 = vld [vmem:[#allocation14] sm:$0xf]
    %v2989 = vld [vmem:[#allocation14 + $0x4] sm:$0xf]
    %v2990 = vld [vmem:[#allocation14 + $0x8] sm:$0xf]
    %v2991 = vld [vmem:[#allocation14 + $0xc] sm:$0xf]
    %v2992 = vld [vmem:[#allocation14 + $0x10] sm:$0xf]
    %v2993 = vld [vmem:[#allocation14 + $0x14] sm:$0xf]
    %v2994 = vld [vmem:[#allocation14 + $0x18] sm:$0xf]
    %v2995 = vld [vmem:[#allocation14 + $0x1c] sm:$0xf]
    %v2996 = vld [vmem:[#allocation14 + $0x20] sm:$0xf]
    %v2997 = vld [vmem:[#allocation14 + $0x24] sm:$0xf]
    %v2998 = vld [vmem:[#allocation14 + $0x28] sm:$0xf]
    %v2999 = vld [vmem:[#allocation14 + $0x2c] sm:$0xf]
    %v3000 = vld [vmem:[#allocation14 + $0x30] sm:$0xf]
    %v3001 = vld [vmem:[#allocation14 + $0x34] sm:$0xf]
    %v3002 = vld [vmem:[#allocation14 + $0x38] sm:$0xf]
    %v3003 = vld [vmem:[#allocation14 + $0x3c] sm:$0xf]
    %v3004 = vld [vmem:[#allocation14 + $0x40] sm:$0xf]
    %v3005 = vld [vmem:[#allocation14 + $0x44] sm:$0xf]
    %v3006 = vld [vmem:[#allocation14 + $0x48] sm:$0xf]
    %v3007 = vld [vmem:[#allocation14 + $0x4c] sm:$0xf]
    %v3008 = vld [vmem:[#allocation14 + $0x50] sm:$0xf]
    %v3009 = vld [vmem:[#allocation14 + $0x54] sm:$0xf]
    %v3010 = vld [vmem:[#allocation14 + $0x58] sm:$0xf]
    %v3011 = vld [vmem:[#allocation14 + $0x5c] sm:$0xf]
    %v3012 = vld [vmem:[#allocation14 + $0x60] sm:$0xf]
    %v3013 = vld [vmem:[#allocation14 + $0x64] sm:$0xf]
    %v3014 = vld [vmem:[#allocation14 + $0x68] sm:$0xf]
    %v3015 = vld [vmem:[#allocation14 + $0x6c] sm:$0xf]
    %v3016 = vld [vmem:[#allocation14 + $0x70] sm:$0xf]
    %v3017 = vld [vmem:[#allocation14 + $0x74] sm:$0xf]
    %v3018 = vld [vmem:[#allocation14 + $0x78] sm:$0xf]
    %v3019 = vld [vmem:[#allocation14 + $0x7c] sm:$0xf]
    %v3020 = vld [vmem:[%s10] sm:$0x1]
    %v3022 = vlaneseq
    %v3023 = vshrl.u32 %v3022, 7
    %v3024 = vsub.s32 0, %v3023
    %v3025 = vrot.slane %v3020, %v3024
    %v3059 = vunpack.c.l.b16 %v2988
    %v3060 = vunpack.c.l.b16 %v2989
    %v3061 = vunpack.c.l.b16 %v2990
    %v3062 = vunpack.c.l.b16 %v2991
    %v3063 = vunpack.c.l.b16 %v2992
    %v3064 = vunpack.c.l.b16 %v2993
    %v3065 = vunpack.c.l.b16 %v2994
    %v3066 = vunpack.c.l.b16 %v2995
    %v3067 = vunpack.c.l.b16 %v2996
    %v3068 = vunpack.c.l.b16 %v2997
    %v3069 = vunpack.c.l.b16 %v2998
    %v3070 = vunpack.c.l.b16 %v2999
    %v3071 = vunpack.c.l.b16 %v3000
    %v3072 = vunpack.c.l.b16 %v3001
    %v3073 = vunpack.c.l.b16 %v3002
    %v3074 = vunpack.c.l.b16 %v3003
    %v3075 = vunpack.c.l.b16 %v3004
    %v3076 = vunpack.c.l.b16 %v3005
    %v3077 = vunpack.c.l.b16 %v3006
    %v3078 = vunpack.c.l.b16 %v3007
    %v3079 = vunpack.c.l.b16 %v3008
    %v3080 = vunpack.c.l.b16 %v3009
    %v3081 = vunpack.c.l.b16 %v3010
    %v3082 = vunpack.c.l.b16 %v3011
    %v3083 = vunpack.c.l.b16 %v3012
    %v3084 = vunpack.c.l.b16 %v3013
    %v3085 = vunpack.c.l.b16 %v3014
    %v3086 = vunpack.c.l.b16 %v3015
    %v3087 = vunpack.c.l.b16 %v3016
    %v3088 = vunpack.c.l.b16 %v3017
    %v3089 = vunpack.c.l.b16 %v3018
    %v3090 = vunpack.c.l.b16 %v3019
    %v3091 = vpack.c.b16 %v3060, %v3059
    %v3092 = vpack.c.b16 %v3062, %v3061
    %v3093 = vpack.c.b16 %v3064, %v3063
    %v3094 = vpack.c.b16 %v3066, %v3065
    %v3095 = vpack.c.b16 %v3068, %v3067
    %v3096 = vpack.c.b16 %v3070, %v3069
    %v3097 = vpack.c.b16 %v3072, %v3071
    %v3098 = vpack.c.b16 %v3074, %v3073
    %v3099 = vpack.c.b16 %v3076, %v3075
    %v3100 = vpack.c.b16 %v3078, %v3077
    %v3101 = vpack.c.b16 %v3080, %v3079
    %v3102 = vpack.c.b16 %v3082, %v3081
    %v3103 = vpack.c.b16 %v3084, %v3083
    %v3104 = vpack.c.b16 %v3086, %v3085
    %v3105 = vpack.c.b16 %v3088, %v3087
    %v3106 = vpack.c.b16 %v3090, %v3089
    %3123 = vmatprep.subr.bf16.mxu0 0
    %3124 = vmatpush1.bf16.msra.mxu0 %v3091
    %3125 = vmatprep.subr.bf16.mxu0 0
    %3126 = vmatpush1.bf16.msra.mxu0 %v3092
    %3127 = vmatprep.subr.bf16.mxu0 0
    %3128 = vmatpush1.bf16.msra.mxu0 %v3093
    %3129 = vmatprep.subr.bf16.mxu0 0
    %3130 = vmatpush1.bf16.msra.mxu0 %v3094
    %3131 = vmatprep.subr.bf16.mxu0 0
    %3132 = vmatpush1.bf16.msra.mxu0 %v3095
    %3133 = vmatprep.subr.bf16.mxu0 0
    %3134 = vmatpush1.bf16.msra.mxu0 %v3096
    %3135 = vmatprep.subr.bf16.mxu0 0
    %3136 = vmatpush1.bf16.msra.mxu0 %v3097
    %3137 = vmatprep.subr.bf16.mxu0 0
    %3138 = vmatpush1.bf16.msra.mxu0 %v3098
    %3139 = vmatprep.subr.bf16.mxu0 0
    %3140 = vmatpush1.bf16.msra.mxu0 %v3099
    %3141 = vmatprep.subr.bf16.mxu0 0
    %3142 = vmatpush1.bf16.msra.mxu0 %v3100
    %3143 = vmatprep.subr.bf16.mxu0 0
    %3144 = vmatpush1.bf16.msra.mxu0 %v3101
    %3145 = vmatprep.subr.bf16.mxu0 0
    %3146 = vmatpush1.bf16.msra.mxu0 %v3102
    %3147 = vmatprep.subr.bf16.mxu0 0
    %3148 = vmatpush1.bf16.msra.mxu0 %v3103
    %3149 = vmatprep.subr.bf16.mxu0 0
    %3150 = vmatpush1.bf16.msra.mxu0 %v3104
    %3151 = vmatprep.subr.bf16.mxu0 0
    %3152 = vmatpush1.bf16.msra.mxu0 %v3105
    %3153 = vmatprep.subr.bf16.mxu0 0
    %3154 = vmatpush1.bf16.msra.mxu0 %v3106
    %3155 = vmatprep.mubr.bf16.mxu0 %v2987
    %3156 = vmatmul.mubr.bf16.gmra.mrb[0].mxu0 %v2986
    %v3157 = vpop.f32.mrb[0].mxu0
    %v3158 = vadd.f32 %v3025, %v3157
    %v3159 = vpop.f32.mrb[0].mxu0
    %v3160 = vpop.f32.mrb[0].mxu0
    %v3161 = vpop.f32.mrb[0].mxu0
    %3162 = vdwg.mxu0
    %3163 = vst [vmem:[#allocation16] sm:$0xff] %v3158
    // Predicated region
    $region78: #{tpu_custom_call.1} parent=1 // pred_check
      _
    $region79: #{tpu_custom_call.1} parent=1 // pred_check_branch
      %3165 = sbr.rel (0) target = $region81
    $region80: #{tpu_custom_call.1} parent=1 // pred_region
      %s3167 = ssub.s32 128, 128
      %3168 = vsyncadd [#allocation4], %s3167
      %s3170 = sshll.u32 [#allocation16], 4
      %s3171 = int_to_ptr.vmem [resolvable:$true] %s3170
      %3173 = dma.vmem_to_hbm [thread:$0]  %s3171, 128, %s11, [#allocation4]
    $region81: #{tpu_custom_call.1} parent=1 // pred_fallthru
      _
    // Predicated region
    $region82: #{tpu_custom_call.1} parent=1 // pred_check
      _
    $region83: #{tpu_custom_call.1} parent=1 // pred_check_branch
      %3175 = sbr.rel (0) target = $region85
    $region84: #{tpu_custom_call.1} parent=1 // pred_region
      %3176 = dma.done [#allocation4], 128
    $region85: #{tpu_custom_call.1} parent=1 // pred_fallthru
      _
    %3177 = vsyncpa [#allocation3], 1
    %3178 = vsyncpa [#allocation6], 1
    %3179 = vsyncpa [#allocation9], 1
    %3180 = vsyncpa [#allocation12], 1
    %3181 = vsyncpa [#allocation15], 1
    %3182 = vsyncpa [#allocation4], 1

</llo_original>
